<compile_context>
chip_gen: v5e
topology: v5e:2x2
jax: 0.10.0
libtpu: 0.0.40
codegen_flags: <defaults>
</compile_context>

<pallas_src>
import jax
import jax.numpy as jnp
from jax.experimental import pallas as pl
from jax.experimental.pallas import tpu as pltpu

# ---------------- synthetic "config" ----------------
D_MODEL = 32
N_HEADS = 4
HEAD_DIM = D_MODEL // N_HEADS
FFN_DIM = 64
VOCAB = 50
MAX_POS = 64
PAD_ID = 1
POS_OFFSET = 2          # LearnedPositionalEmbedding offset
LN_EPS = 1e-5           # torch.nn.LayerNorm default
NEG = -1e30             # finite "minus infinity" for masking (avoids -inf -> NaN softmax)


# ---------------- small shared math ----------------
def _layer_norm(x, gamma, beta):
    mean = jnp.mean(x, axis=-1, keepdims=True)
    var = jnp.mean(jnp.square(x - mean), axis=-1, keepdims=True)
    return (x - mean) * jax.lax.rsqrt(var + LN_EPS) * gamma + beta


def _gelu_tanh(x):
    # tanh-approx GELU (lowers to EUP tanh); abs deviation from exact erf-GELU <~3e-4.
    return 0.5 * x * (1.0 + jnp.tanh(0.7978845608028654 * (x + 0.044715 * x * x * x)))


# ---------------- Pallas kernel ----------------
def _fused_attention(q_in, kv_in, add_mask, w_q, b_q, w_kv, b_kv, w_o, b_o):
    """Multi-head attention on flattened row slabs.
    q_in: (R, D)   kv_in: (Rk, D)   add_mask: (R, Rk) additive (0 / -1e30),
    already containing causal + key-padding + cross-batch (block-diagonal) masking.
    w_q/b_q have the 1/sqrt(head_dim) scaling folded in.
    """
    q = jnp.dot(q_in, w_q, preferred_element_type=jnp.float32) + b_q        # (R, D)
    kv = jnp.dot(kv_in, w_kv, preferred_element_type=jnp.float32) + b_kv    # (Rk, 2D)
    k = kv[:, :D_MODEL]
    v = kv[:, D_MODEL:]
    heads = []
    for h in range(N_HEADS):                         # static unroll; full-slab matmuls per head
        sl = slice(h * HEAD_DIM, (h + 1) * HEAD_DIM)
        s = jax.lax.dot_general(q[:, sl], k[:, sl], (((1,), (1,)), ((), ())),
                                preferred_element_type=jnp.float32)          # (R, Rk)
        s = s + add_mask
        s = s - jnp.max(s, axis=-1, keepdims=True)
        p = jnp.exp(s)
        p = p * pl.reciprocal(jnp.sum(p, axis=-1, keepdims=True), approx=True)
        heads.append(jnp.dot(p, v[:, sl], preferred_element_type=jnp.float32))  # (R, hd)
    o = jnp.concatenate(heads, axis=-1)                                      # (R, D)
    return jnp.dot(o, w_o, preferred_element_type=jnp.float32) + b_o


def decoder_kernel(x_ref, enc_ref, smask_ref, cmask_ref,
                   wq_ref, bq_ref, wkv_ref, bkv_ref, wo_ref, bo_ref,
                   ln_ref, w1_ref, b1_ref, w2_ref, b2_ref, out_ref):
    # ln rows: 0:g_emb 1:b_emb 2:g_sa 3:b_sa 4:g_ca 5:b_ca 6:g_ffn 7:b_ffn (each (1, D))
    ln = ln_ref[...]
    wq, bq = wq_ref[...], bq_ref[...]
    wkv, bkv = wkv_ref[...], bkv_ref[...]
    wo, bo = wo_ref[...], bo_ref[...]

    x = _layer_norm(x_ref[...], ln[0], ln[1])                # layernorm_embedding
    # --- self attention (causal + key padding + cross-batch all in smask) ---
    a = _fused_attention(x, x, smask_ref[0],
                         wq[0], bq[0], wkv[0], bkv[0], wo[0], bo[0])
    x = _layer_norm(x + a, ln[2], ln[3])
    # --- cross attention over encoder states ---
    a = _fused_attention(x, enc_ref[...], cmask_ref[0],
                         wq[1], bq[1], wkv[1], bkv[1], wo[1], bo[1])
    x = _layer_norm(x + a, ln[4], ln[5])
    # --- feed-forward ---
    h = _gelu_tanh(jnp.dot(x, w1_ref[...], preferred_element_type=jnp.float32) + b1_ref[...])
    y = jnp.dot(h, w2_ref[...], preferred_element_type=jnp.float32) + b2_ref[...]
    out_ref[...] = _layer_norm(x + y, ln[6], ln[7])


# ---------------- wrapper helpers ----------------
def _num_batch_blocks(batch):
    # v7x-class chips have 2 TensorCores -> split batch 2-way ("parallel" grid axis).
    # Single-TC chips (v5e/v6e): collapse the grid to one step (grid loop = pure overhead).
    try:
        kind = jax.devices()[0].device_kind.lower()
    except Exception:
        kind = ""
    two_core = ("v7" in kind) or ("tpu7" in kind)
    return 2 if (two_core and batch % 2 == 0) else 1


def _block_diag_mask(per_batch, nb, bb):
    """(B, Sq, Sk) per-batch additive masks -> (nb, bb*Sq, bb*Sk) block-diagonal masks
    (cross-batch entries get NEG) matching the batch-flattened row layout."""
    _, sq, sk = per_batch.shape
    pb = per_batch.reshape(nb, bb, sq, sk)
    same = jnp.arange(bb)[:, None] == jnp.arange(bb)[None, :]
    out = jnp.where(same[None, :, None, :, None], pb[:, :, :, None, :], NEG)
    return out.reshape(nb, bb * sq, bb * sk)


def _const_spec(arr):
    nd = arr.ndim
    return pl.BlockSpec(arr.shape, lambda g, nd=nd: (0,) * nd)


@jax.jit
def parabart_decoder_forward(decoder_input_ids, encoder_hidden_states,
                             decoder_padding_mask, decoder_causal_mask,
                             encoder_attention_mask, params):
    B, S = decoder_input_ids.shape
    Se = encoder_hidden_states.shape[1]
    NB = _num_batch_blocks(B)      # static, resolved at trace time
    BB = B // NB
    R, Rk = BB * S, BB * Se

    # ---- glue: embedding gathers + batch->row flattening ----
    x = (params["embed_tokens"][decoder_input_ids]
         + params["embed_positions"][jnp.arange(S) + POS_OFFSET][None, :, :])
    x_flat = x.astype(jnp.float32).reshape(B * S, D_MODEL)
    enc_flat = encoder_hidden_states.astype(jnp.float32).reshape(B * Se, D_MODEL)

    # ---- additive masks with finite NEG, assembled block-diagonally per grid block ----
    causal_add = jnp.maximum(decoder_causal_mask.astype(jnp.float32), NEG)   # (S, S), no -inf
    dec_pad = decoder_padding_mask.astype(bool)
    enc_pad = encoder_attention_mask.astype(bool)
    self_mask = causal_add[None, :, :] + jnp.where(dec_pad[:, None, :], NEG, 0.0)   # (B, S, S)
    cross_mask = jnp.broadcast_to(jnp.where(enc_pad[:, None, :], NEG, 0.0), (B, S, Se))
    smask = _block_diag_mask(self_mask, NB, BB)    # (NB, R, R)
    cmask = _block_diag_mask(cross_mask, NB, BB)   # (NB, R, Rk)

    in_specs = [
        pl.BlockSpec((R, D_MODEL), lambda g: (g, 0)),     # x rows for this block
        pl.BlockSpec((Rk, D_MODEL), lambda g: (g, 0)),    # encoder rows for this block
        pl.BlockSpec((1, R, R), lambda g: (g, 0, 0)),     # self-attn mask
        pl.BlockSpec((1, R, Rk), lambda g: (g, 0, 0)),    # cross-attn mask
        _const_spec(params["w_q"]), _const_spec(params["b_q"]),
        _const_spec(params["w_kv"]), _const_spec(params["b_kv"]),
        _const_spec(params["w_o"]), _const_spec(params["b_o"]),
        _const_spec(params["ln"]),
        _const_spec(params["w1"]), _const_spec(params["b1"]),
        _const_spec(params["w2"]), _const_spec(params["b2"]),
    ]

    # advisory cost hint (prevents XLA over-serializing around this tiny custom call)
    mm_flops = 4 * B * S * D_MODEL * 4 * D_MODEL                 # q/kv/out projections, both attns
    mm_flops += 4 * N_HEADS * NB * (R * R + R * Rk) * HEAD_DIM   # scores + PV
    mm_flops += 4 * B * S * D_MODEL * FFN_DIM                    # fc1 + fc2
    transc = NB * N_HEADS * (R * R + R * Rk) + B * S * FFN_DIM   # exp + tanh (rough)
    weight_bytes = 4 * sum(params[k].size for k in
                           ("w_q", "b_q", "w_kv", "b_kv", "w_o", "b_o",
                            "ln", "w1", "b1", "w2", "b2"))
    bytes_accessed = weight_bytes + 4 * (x_flat.size + enc_flat.size
                                         + smask.size + cmask.size + B * S * D_MODEL)
    cost = pl.CostEstimate(flops=int(mm_flops), transcendentals=int(transc),
                           bytes_accessed=int(bytes_accessed))

    out_flat = pl.pallas_call(
        decoder_kernel,
        out_shape=jax.ShapeDtypeStruct((B * S, D_MODEL), jnp.float32),
        grid=(NB,),
        in_specs=in_specs,
        out_specs=pl.BlockSpec((R, D_MODEL), lambda g: (g, 0)),
        compiler_params=pltpu.CompilerParams(dimension_semantics=("parallel",)),
        cost_estimate=cost,
    )(x_flat, enc_flat, smask, cmask,
      params["w_q"], params["b_q"], params["w_kv"], params["b_kv"],
      params["w_o"], params["b_o"], params["ln"],
      params["w1"], params["b1"], params["w2"], params["b2"])

    return (out_flat.reshape(B, S, D_MODEL),)


# ---------------- independent pure-JAX reference (exact softmax / exact erf GELU) ----------------
def _ref_mha(q_in, kv_in, key_pad, causal_add, w_q, b_q, w_kv, b_kv, w_o, b_o):
    q = q_in @ w_q + b_q           # scaling already folded into w_q / b_q
    kv = kv_in @ w_kv + b_kv
    k, v = kv[:, :D_MODEL], kv[:, D_MODEL:]
    sq, sk = q.shape[0], k.shape[0]
    qh = q.reshape(sq, N_HEADS, HEAD_DIM)
    kh = k.reshape(sk, N_HEADS, HEAD_DIM)
    vh = v.reshape(sk, N_HEADS, HEAD_DIM)
    s = jnp.einsum("qhd,khd->hqk", qh, kh)
    if causal_add is not None:
        s = s + causal_add[None, :, :]
    s = jnp.where(key_pad[None, None, :], NEG, s)    # masked_fill(key_padding_mask)
    p = jax.nn.softmax(s, axis=-1)
    o = jnp.einsum("hqk,khd->qhd", p, vh).reshape(sq, D_MODEL)
    return o @ w_o + b_o


def reference_forward(ids, enc, dec_pad_mask, causal, enc_attn_mask, params):
    B, S = ids.shape
    x = (params["embed_tokens"][ids]
         + params["embed_positions"][jnp.arange(S) + POS_OFFSET][None, :, :]).astype(jnp.float32)
    causal_add = jnp.maximum(causal.astype(jnp.float32), NEG)
    ln = params["ln"]
    outs = []
    for b in range(B):
        xb = _layer_norm(x[b], ln[0], ln[1])
        a = _ref_mha(xb, xb, dec_pad_mask[b], causal_add,
                     params["w_q"][0], params["b_q"][0], params["w_kv"][0],
                     params["b_kv"][0], params["w_o"][0], params["b_o"][0])
        xb = _layer_norm(xb + a, ln[2], ln[3])
        a = _ref_mha(xb, enc[b].astype(jnp.float32), enc_attn_mask[b], None,
                     params["w_q"][1], params["b_q"][1], params["w_kv"][1],
                     params["b_kv"][1], params["w_o"][1], params["b_o"][1])
        xb = _layer_norm(xb + a, ln[4], ln[5])
        h = jax.nn.gelu(xb @ params["w1"] + params["b1"], approximate=False)  # exact erf GELU
        y = h @ params["w2"] + params["b2"]
        xb = _layer_norm(xb + y, ln[6], ln[7])
        outs.append(xb)
    return jnp.stack(outs, axis=0)


# ---------------- deterministic parameter init (fused, lane-friendly layout) ----------------
def init_params(key):
    ks = jax.random.split(key, 14)

    def nrm(k, shape, scale=0.02):
        return scale * jax.random.normal(k, shape, dtype=jnp.float32)

    scaling = float(HEAD_DIM) ** -0.5
    embed_tokens = nrm(ks[0], (VOCAB, D_MODEL)).at[PAD_ID].set(0.0)      # padding_idx row = 0
    embed_positions = nrm(ks[1], (MAX_POS + POS_OFFSET, D_MODEL)).at[PAD_ID].set(0.0)

    # fused attention weights, a=0: self-attn, a=1: cross-attn
    #   w_q  (2, D, D)    b_q  (2, 1, D)    -- 1/sqrt(head_dim) query scaling folded in
    #   w_kv (2, D, 2D)   b_kv (2, 1, 2D)   -- K | V packed along lanes
    #   w_o  (2, D, D)    b_o  (2, 1, D)
    w_q = nrm(ks[2], (2, D_MODEL, D_MODEL)) * scaling
    b_q = nrm(ks[3], (2, 1, D_MODEL), 0.01) * scaling
    w_kv = nrm(ks[4], (2, D_MODEL, 2 * D_MODEL))
    b_kv = nrm(ks[5], (2, 1, 2 * D_MODEL), 0.01)
    w_o = nrm(ks[6], (2, D_MODEL, D_MODEL))
    b_o = nrm(ks[7], (2, 1, D_MODEL), 0.01)

    ln_g = 1.0 + nrm(ks[8], (4, 1, D_MODEL), 0.01)   # emb, self, cross, ffn gammas
    ln_b = nrm(ks[9], (4, 1, D_MODEL), 0.01)
    ln = jnp.stack([ln_g[0], ln_b[0], ln_g[1], ln_b[1],
                    ln_g[2], ln_b[2], ln_g[3], ln_b[3]], axis=0)  # (8, 1, D)

    w1 = nrm(ks[10], (D_MODEL, FFN_DIM))
    b1 = nrm(ks[11], (1, FFN_DIM), 0.01)
    w2 = nrm(ks[12], (FFN_DIM, D_MODEL))
    b2 = nrm(ks[13], (1, D_MODEL), 0.01)

    return dict(embed_tokens=embed_tokens, embed_positions=embed_positions,
                w_q=w_q, b_q=b_q, w_kv=w_kv, b_kv=b_kv, w_o=w_o, b_o=b_o,
                ln=ln, w1=w1, b1=b1, w2=w2, b2=b2)


if __name__ == "__main__":
    key = jax.random.PRNGKey(0)
    pkey, ikey, ekey = jax.random.split(key, 3)
    params = init_params(pkey)

    B, S, Se = 2, 8, 8
    decoder_input_ids = jax.random.randint(ikey, (B, S), 2, VOCAB)
    decoder_input_ids = decoder_input_ids.at[1, S - 2:].set(PAD_ID)       # pad tail of batch 1
    decoder_padding_mask = (decoder_input_ids == PAD_ID)                  # True = pad (masked)

    encoder_hidden_states = 0.1 * jax.random.normal(ekey, (B, Se, D_MODEL), dtype=jnp.float32)
    encoder_attention_mask = jnp.zeros((B, Se), dtype=bool).at[1, Se - 3:].set(True)  # True = masked

    decoder_causal_mask = jnp.where(
        jnp.triu(jnp.ones((S, S), dtype=bool), k=1), -jnp.inf, 0.0).astype(jnp.float32)

    (out,) = parabart_decoder_forward(decoder_input_ids, encoder_hidden_states,
                                      decoder_padding_mask, decoder_causal_mask,
                                      encoder_attention_mask, params)
    out = jax.block_until_ready(out)

    ref = reference_forward(decoder_input_ids, encoder_hidden_states,
                            decoder_padding_mask, decoder_causal_mask,
                            encoder_attention_mask, params)

    assert out.shape == (B, S, D_MODEL), out.shape
    assert bool(jnp.all(jnp.isfinite(out)))
    # 2e-3 tolerance covers the approx-reciprocal softmax and tanh-GELU deviations
    # from the exact-math reference (observed error is ~1e-4 level).
    assert bool(jnp.allclose(out, ref, rtol=2e-3, atol=2e-3)), \
        float(jnp.max(jnp.abs(out - ref)))
    print("KERNEL_OK")
</pallas_src>

<mosaic_0001>
module attributes {stable_mosaic.version = 11 : i64} {
  func.func @decoder_kernel(%arg0: i32, %arg1: memref<16x32xf32, #tpu.memory_space<vmem>>, %arg2: memref<16x32xf32, #tpu.memory_space<vmem>>, %arg3: memref<1x16x16xf32, #tpu.memory_space<vmem>>, %arg4: memref<1x16x16xf32, #tpu.memory_space<vmem>>, %arg5: memref<2x32x32xf32, #tpu.memory_space<vmem>>, %arg6: memref<2x1x32xf32, #tpu.memory_space<vmem>>, %arg7: memref<2x32x64xf32, #tpu.memory_space<vmem>>, %arg8: memref<2x1x64xf32, #tpu.memory_space<vmem>>, %arg9: memref<2x32x32xf32, #tpu.memory_space<vmem>>, %arg10: memref<2x1x32xf32, #tpu.memory_space<vmem>>, %arg11: memref<8x1x32xf32, #tpu.memory_space<vmem>>, %arg12: memref<32x64xf32, #tpu.memory_space<vmem>>, %arg13: memref<1x64xf32, #tpu.memory_space<vmem>>, %arg14: memref<64x32xf32, #tpu.memory_space<vmem>>, %arg15: memref<1x32xf32, #tpu.memory_space<vmem>>, %arg16: memref<16x32xf32, #tpu.memory_space<vmem>>) attributes {dimension_semantics = [#tpu.dimension_semantics<parallel>], iteration_bounds = array<i64: 1>, scalar_prefetch = 0 : i64, scratch_operands = 0 : i64, tpu.core_type = #tpu.core_type<tc>, window_params = [{transform_indices = @transform_0, window_bounds = array<i64: 16, 32>}, {transform_indices = @transform_1, window_bounds = array<i64: 16, 32>}, {transform_indices = @transform_2, window_bounds = array<i64: 1, 16, 16>}, {transform_indices = @transform_3, window_bounds = array<i64: 1, 16, 16>}, {pipeline_mode = #tpu.pipeline_mode<synchronous>, transform_indices = @transform_4, window_bounds = array<i64: 2, 32, 32>}, {pipeline_mode = #tpu.pipeline_mode<synchronous>, transform_indices = @transform_5, window_bounds = array<i64: 2, 1, 32>}, {pipeline_mode = #tpu.pipeline_mode<synchronous>, transform_indices = @transform_6, window_bounds = array<i64: 2, 32, 64>}, {pipeline_mode = #tpu.pipeline_mode<synchronous>, transform_indices = @transform_7, window_bounds = array<i64: 2, 1, 64>}, {pipeline_mode = #tpu.pipeline_mode<synchronous>, transform_indices = @transform_8, window_bounds = array<i64: 2, 32, 32>}, {pipeline_mode = #tpu.pipeline_mode<synchronous>, transform_indices = @transform_9, window_bounds = array<i64: 2, 1, 32>}, {pipeline_mode = #tpu.pipeline_mode<synchronous>, transform_indices = @transform_10, window_bounds = array<i64: 8, 1, 32>}, {pipeline_mode = #tpu.pipeline_mode<synchronous>, transform_indices = @transform_11, window_bounds = array<i64: 32, 64>}, {pipeline_mode = #tpu.pipeline_mode<synchronous>, transform_indices = @transform_12, window_bounds = array<i64: 1, 64>}, {pipeline_mode = #tpu.pipeline_mode<synchronous>, transform_indices = @transform_13, window_bounds = array<i64: 64, 32>}, {pipeline_mode = #tpu.pipeline_mode<synchronous>, transform_indices = @transform_14, window_bounds = array<i64: 1, 32>}, {transform_indices = @transform_15, window_bounds = array<i64: 16, 32>}]} {
    %c0 = arith.constant 0 : index
    %c0_0 = arith.constant 0 : index
    %c0_1 = arith.constant 0 : index
    %0 = vector.load %arg11[%c0, %c0_0, %c0_1] : memref<8x1x32xf32, #tpu.memory_space<vmem>>, vector<8x1x32xf32>
    %c0_2 = arith.constant 0 : index
    %c0_3 = arith.constant 0 : index
    %c0_4 = arith.constant 0 : index
    %1 = vector.load %arg5[%c0_2, %c0_3, %c0_4] : memref<2x32x32xf32, #tpu.memory_space<vmem>>, vector<2x32x32xf32>
    %c0_5 = arith.constant 0 : index
    %c0_6 = arith.constant 0 : index
    %c0_7 = arith.constant 0 : index
    %2 = vector.load %arg6[%c0_5, %c0_6, %c0_7] : memref<2x1x32xf32, #tpu.memory_space<vmem>>, vector<2x1x32xf32>
    %c0_8 = arith.constant 0 : index
    %c0_9 = arith.constant 0 : index
    %c0_10 = arith.constant 0 : index
    %3 = vector.load %arg7[%c0_8, %c0_9, %c0_10] : memref<2x32x64xf32, #tpu.memory_space<vmem>>, vector<2x32x64xf32>
    %c0_11 = arith.constant 0 : index
    %c0_12 = arith.constant 0 : index
    %c0_13 = arith.constant 0 : index
    %4 = vector.load %arg8[%c0_11, %c0_12, %c0_13] : memref<2x1x64xf32, #tpu.memory_space<vmem>>, vector<2x1x64xf32>
    %c0_14 = arith.constant 0 : index
    %c0_15 = arith.constant 0 : index
    %c0_16 = arith.constant 0 : index
    %5 = vector.load %arg9[%c0_14, %c0_15, %c0_16] : memref<2x32x32xf32, #tpu.memory_space<vmem>>, vector<2x32x32xf32>
    %c0_17 = arith.constant 0 : index
    %c0_18 = arith.constant 0 : index
    %c0_19 = arith.constant 0 : index
    %6 = vector.load %arg10[%c0_17, %c0_18, %c0_19] : memref<2x1x32xf32, #tpu.memory_space<vmem>>, vector<2x1x32xf32>
    %c0_20 = arith.constant 0 : index
    %c0_21 = arith.constant 0 : index
    %7 = vector.load %arg1[%c0_20, %c0_21] : memref<16x32xf32, #tpu.memory_space<vmem>>, vector<16x32xf32>
    %8 = vector.extract_strided_slice %0 {offsets = [0, 0, 0], sizes = [1, 1, 32], strides = [1, 1, 1]} : vector<8x1x32xf32> to vector<1x1x32xf32>
    %9 = vector.shape_cast %8 : vector<1x1x32xf32> to vector<1x32xf32>
    %10 = vector.extract_strided_slice %0 {offsets = [1, 0, 0], sizes = [1, 1, 32], strides = [1, 1, 1]} : vector<8x1x32xf32> to vector<1x1x32xf32>
    %11 = vector.shape_cast %10 : vector<1x1x32xf32> to vector<1x32xf32>
    %cst = arith.constant dense<0.000000e+00> : vector<16xf32>
    %12 = vector.multi_reduction <add>, %7, %cst [1] : vector<16x32xf32> to vector<16xf32>
    %13 = vector.shape_cast %12 : vector<16xf32> to vector<16x1xf32>
    %cst_22 = arith.constant 3.200000e+01 : f32
    %14 = vector.broadcast %cst_22 : f32 to vector<16x1xf32>
    %15 = arith.divf %13, %14 : vector<16x1xf32>
    %16 = vector.broadcast %15 : vector<16x1xf32> to vector<16x32xf32>
    %17 = arith.subf %7, %16 : vector<16x32xf32>
    %18 = arith.mulf %17, %17 : vector<16x32xf32>
    %cst_23 = arith.constant dense<0.000000e+00> : vector<16xf32>
    %19 = vector.multi_reduction <add>, %18, %cst_23 [1] : vector<16x32xf32> to vector<16xf32>
    %20 = vector.shape_cast %19 : vector<16xf32> to vector<16x1xf32>
    %cst_24 = arith.constant 3.200000e+01 : f32
    %21 = vector.broadcast %cst_24 : f32 to vector<16x1xf32>
    %22 = arith.divf %20, %21 : vector<16x1xf32>
    %23 = vector.broadcast %15 : vector<16x1xf32> to vector<16x32xf32>
    %24 = arith.subf %7, %23 : vector<16x32xf32>
    %cst_25 = arith.constant 9.99999974E-6 : f32
    %25 = vector.broadcast %cst_25 : f32 to vector<16x1xf32>
    %26 = arith.addf %22, %25 : vector<16x1xf32>
    %27 = math.rsqrt %26 : vector<16x1xf32>
    %28 = vector.broadcast %27 : vector<16x1xf32> to vector<16x32xf32>
    %29 = arith.mulf %24, %28 : vector<16x32xf32>
    %30 = vector.broadcast %9 : vector<1x32xf32> to vector<16x32xf32>
    %31 = arith.mulf %29, %30 : vector<16x32xf32>
    %32 = vector.broadcast %11 : vector<1x32xf32> to vector<16x32xf32>
    %33 = arith.addf %31, %32 : vector<16x32xf32>
    %c0_26 = arith.constant 0 : index
    %c0_27 = arith.constant 0 : index
    %c0_28 = arith.constant 0 : index
    %34 = vector.load %arg3[%c0_26, %c0_27, %c0_28] : memref<1x16x16xf32, #tpu.memory_space<vmem>>, vector<1x16x16xf32>
    %35 = vector.shape_cast %34 : vector<1x16x16xf32> to vector<16x16xf32>
    %36 = vector.extract_strided_slice %1 {offsets = [0, 0, 0], sizes = [1, 32, 32], strides = [1, 1, 1]} : vector<2x32x32xf32> to vector<1x32x32xf32>
    %37 = vector.shape_cast %36 : vector<1x32x32xf32> to vector<32x32xf32>
    %38 = vector.extract_strided_slice %2 {offsets = [0, 0, 0], sizes = [1, 1, 32], strides = [1, 1, 1]} : vector<2x1x32xf32> to vector<1x1x32xf32>
    %39 = vector.shape_cast %38 : vector<1x1x32xf32> to vector<1x32xf32>
    %40 = vector.extract_strided_slice %3 {offsets = [0, 0, 0], sizes = [1, 32, 64], strides = [1, 1, 1]} : vector<2x32x64xf32> to vector<1x32x64xf32>
    %41 = vector.shape_cast %40 : vector<1x32x64xf32> to vector<32x64xf32>
    %42 = vector.extract_strided_slice %4 {offsets = [0, 0, 0], sizes = [1, 1, 64], strides = [1, 1, 1]} : vector<2x1x64xf32> to vector<1x1x64xf32>
    %43 = vector.shape_cast %42 : vector<1x1x64xf32> to vector<1x64xf32>
    %44 = vector.extract_strided_slice %5 {offsets = [0, 0, 0], sizes = [1, 32, 32], strides = [1, 1, 1]} : vector<2x32x32xf32> to vector<1x32x32xf32>
    %45 = vector.shape_cast %44 : vector<1x32x32xf32> to vector<32x32xf32>
    %46 = vector.extract_strided_slice %6 {offsets = [0, 0, 0], sizes = [1, 1, 32], strides = [1, 1, 1]} : vector<2x1x32xf32> to vector<1x1x32xf32>
    %47 = vector.shape_cast %46 : vector<1x1x32xf32> to vector<1x32xf32>
    %cst_29 = arith.constant dense<0.000000e+00> : vector<16x32xf32>
    %48 = tpu.matmul %33, %37, %cst_29 {dimension_numbers = #tpu.dot_dimension_numbers<[1], [0], [0], [1], [0, 0, 1, 1], [], []>} : vector<16x32xf32>, vector<32x32xf32>, vector<16x32xf32> -> vector<16x32xf32>
    %49 = vector.broadcast %39 : vector<1x32xf32> to vector<16x32xf32>
    %50 = arith.addf %48, %49 : vector<16x32xf32>
    %cst_30 = arith.constant dense<0.000000e+00> : vector<16x64xf32>
    %51 = tpu.matmul %33, %41, %cst_30 {dimension_numbers = #tpu.dot_dimension_numbers<[1], [0], [0], [1], [0, 0, 1, 1], [], []>} : vector<16x32xf32>, vector<32x64xf32>, vector<16x64xf32> -> vector<16x64xf32>
    %52 = vector.broadcast %43 : vector<1x64xf32> to vector<16x64xf32>
    %53 = arith.addf %51, %52 : vector<16x64xf32>
    %54 = vector.extract_strided_slice %53 {offsets = [0, 0], sizes = [16, 32], strides = [1, 1]} : vector<16x64xf32> to vector<16x32xf32>
    %55 = vector.extract_strided_slice %53 {offsets = [0, 32], sizes = [16, 32], strides = [1, 1]} : vector<16x64xf32> to vector<16x32xf32>
    %56 = vector.extract_strided_slice %50 {offsets = [0, 0], sizes = [16, 8], strides = [1, 1]} : vector<16x32xf32> to vector<16x8xf32>
    %57 = vector.extract_strided_slice %54 {offsets = [0, 0], sizes = [16, 8], strides = [1, 1]} : vector<16x32xf32> to vector<16x8xf32>
    %cst_31 = arith.constant dense<0.000000e+00> : vector<16x16xf32>
    %58 = tpu.matmul %56, %57, %cst_31 {dimension_numbers = #tpu.dot_dimension_numbers<[1], [1], [0], [0], [0, 0, 1, 0], [], []>} : vector<16x8xf32>, vector<16x8xf32>, vector<16x16xf32> -> vector<16x16xf32>
    %59 = arith.addf %58, %35 : vector<16x16xf32>
    %cst_32 = arith.constant dense<0xFF800000> : vector<16xf32>
    %60 = vector.multi_reduction <maximumf>, %59, %cst_32 [1] : vector<16x16xf32> to vector<16xf32>
    %61 = vector.shape_cast %60 : vector<16xf32> to vector<16x1xf32>
    %62 = vector.broadcast %61 : vector<16x1xf32> to vector<16x16xf32>
    %63 = arith.subf %59, %62 : vector<16x16xf32>
    %64 = math.exp %63 : vector<16x16xf32>
    %cst_33 = arith.constant dense<0.000000e+00> : vector<16xf32>
    %65 = vector.multi_reduction <add>, %64, %cst_33 [1] : vector<16x16xf32> to vector<16xf32>
    %66 = vector.shape_cast %65 : vector<16xf32> to vector<16x1xf32>
    %67 = tpu.reciprocal %66 {approx = true} : vector<16x1xf32> -> vector<16x1xf32>
    %68 = vector.broadcast %67 : vector<16x1xf32> to vector<16x16xf32>
    %69 = arith.mulf %64, %68 : vector<16x16xf32>
    %70 = vector.extract_strided_slice %55 {offsets = [0, 0], sizes = [16, 8], strides = [1, 1]} : vector<16x32xf32> to vector<16x8xf32>
    %cst_34 = arith.constant dense<0.000000e+00> : vector<16x8xf32>
    %71 = tpu.matmul %69, %70, %cst_34 {dimension_numbers = #tpu.dot_dimension_numbers<[1], [0], [0], [1], [0, 0, 1, 1], [], []>} : vector<16x16xf32>, vector<16x8xf32>, vector<16x8xf32> -> vector<16x8xf32>
    %72 = vector.extract_strided_slice %50 {offsets = [0, 8], sizes = [16, 8], strides = [1, 1]} : vector<16x32xf32> to vector<16x8xf32>
    %73 = vector.extract_strided_slice %54 {offsets = [0, 8], sizes = [16, 8], strides = [1, 1]} : vector<16x32xf32> to vector<16x8xf32>
    %cst_35 = arith.constant dense<0.000000e+00> : vector<16x16xf32>
    %74 = tpu.matmul %72, %73, %cst_35 {dimension_numbers = #tpu.dot_dimension_numbers<[1], [1], [0], [0], [0, 0, 1, 0], [], []>} : vector<16x8xf32>, vector<16x8xf32>, vector<16x16xf32> -> vector<16x16xf32>
    %75 = arith.addf %74, %35 : vector<16x16xf32>
    %cst_36 = arith.constant dense<0xFF800000> : vector<16xf32>
    %76 = vector.multi_reduction <maximumf>, %75, %cst_36 [1] : vector<16x16xf32> to vector<16xf32>
    %77 = vector.shape_cast %76 : vector<16xf32> to vector<16x1xf32>
    %78 = vector.broadcast %77 : vector<16x1xf32> to vector<16x16xf32>
    %79 = arith.subf %75, %78 : vector<16x16xf32>
    %80 = math.exp %79 : vector<16x16xf32>
    %cst_37 = arith.constant dense<0.000000e+00> : vector<16xf32>
    %81 = vector.multi_reduction <add>, %80, %cst_37 [1] : vector<16x16xf32> to vector<16xf32>
    %82 = vector.shape_cast %81 : vector<16xf32> to vector<16x1xf32>
    %83 = tpu.reciprocal %82 {approx = true} : vector<16x1xf32> -> vector<16x1xf32>
    %84 = vector.broadcast %83 : vector<16x1xf32> to vector<16x16xf32>
    %85 = arith.mulf %80, %84 : vector<16x16xf32>
    %86 = vector.extract_strided_slice %55 {offsets = [0, 8], sizes = [16, 8], strides = [1, 1]} : vector<16x32xf32> to vector<16x8xf32>
    %cst_38 = arith.constant dense<0.000000e+00> : vector<16x8xf32>
    %87 = tpu.matmul %85, %86, %cst_38 {dimension_numbers = #tpu.dot_dimension_numbers<[1], [0], [0], [1], [0, 0, 1, 1], [], []>} : vector<16x16xf32>, vector<16x8xf32>, vector<16x8xf32> -> vector<16x8xf32>
    %88 = vector.extract_strided_slice %50 {offsets = [0, 16], sizes = [16, 8], strides = [1, 1]} : vector<16x32xf32> to vector<16x8xf32>
    %89 = vector.extract_strided_slice %54 {offsets = [0, 16], sizes = [16, 8], strides = [1, 1]} : vector<16x32xf32> to vector<16x8xf32>
    %cst_39 = arith.constant dense<0.000000e+00> : vector<16x16xf32>
    %90 = tpu.matmul %88, %89, %cst_39 {dimension_numbers = #tpu.dot_dimension_numbers<[1], [1], [0], [0], [0, 0, 1, 0], [], []>} : vector<16x8xf32>, vector<16x8xf32>, vector<16x16xf32> -> vector<16x16xf32>
    %91 = arith.addf %90, %35 : vector<16x16xf32>
    %cst_40 = arith.constant dense<0xFF800000> : vector<16xf32>
    %92 = vector.multi_reduction <maximumf>, %91, %cst_40 [1] : vector<16x16xf32> to vector<16xf32>
    %93 = vector.shape_cast %92 : vector<16xf32> to vector<16x1xf32>
    %94 = vector.broadcast %93 : vector<16x1xf32> to vector<16x16xf32>
    %95 = arith.subf %91, %94 : vector<16x16xf32>
    %96 = math.exp %95 : vector<16x16xf32>
    %cst_41 = arith.constant dense<0.000000e+00> : vector<16xf32>
    %97 = vector.multi_reduction <add>, %96, %cst_41 [1] : vector<16x16xf32> to vector<16xf32>
    %98 = vector.shape_cast %97 : vector<16xf32> to vector<16x1xf32>
    %99 = tpu.reciprocal %98 {approx = true} : vector<16x1xf32> -> vector<16x1xf32>
    %100 = vector.broadcast %99 : vector<16x1xf32> to vector<16x16xf32>
    %101 = arith.mulf %96, %100 : vector<16x16xf32>
    %102 = vector.extract_strided_slice %55 {offsets = [0, 16], sizes = [16, 8], strides = [1, 1]} : vector<16x32xf32> to vector<16x8xf32>
    %cst_42 = arith.constant dense<0.000000e+00> : vector<16x8xf32>
    %103 = tpu.matmul %101, %102, %cst_42 {dimension_numbers = #tpu.dot_dimension_numbers<[1], [0], [0], [1], [0, 0, 1, 1], [], []>} : vector<16x16xf32>, vector<16x8xf32>, vector<16x8xf32> -> vector<16x8xf32>
    %104 = vector.extract_strided_slice %50 {offsets = [0, 24], sizes = [16, 8], strides = [1, 1]} : vector<16x32xf32> to vector<16x8xf32>
    %105 = vector.extract_strided_slice %54 {offsets = [0, 24], sizes = [16, 8], strides = [1, 1]} : vector<16x32xf32> to vector<16x8xf32>
    %cst_43 = arith.constant dense<0.000000e+00> : vector<16x16xf32>
    %106 = tpu.matmul %104, %105, %cst_43 {dimension_numbers = #tpu.dot_dimension_numbers<[1], [1], [0], [0], [0, 0, 1, 0], [], []>} : vector<16x8xf32>, vector<16x8xf32>, vector<16x16xf32> -> vector<16x16xf32>
    %107 = arith.addf %106, %35 : vector<16x16xf32>
    %cst_44 = arith.constant dense<0xFF800000> : vector<16xf32>
    %108 = vector.multi_reduction <maximumf>, %107, %cst_44 [1] : vector<16x16xf32> to vector<16xf32>
    %109 = vector.shape_cast %108 : vector<16xf32> to vector<16x1xf32>
    %110 = vector.broadcast %109 : vector<16x1xf32> to vector<16x16xf32>
    %111 = arith.subf %107, %110 : vector<16x16xf32>
    %112 = math.exp %111 : vector<16x16xf32>
    %cst_45 = arith.constant dense<0.000000e+00> : vector<16xf32>
    %113 = vector.multi_reduction <add>, %112, %cst_45 [1] : vector<16x16xf32> to vector<16xf32>
    %114 = vector.shape_cast %113 : vector<16xf32> to vector<16x1xf32>
    %115 = tpu.reciprocal %114 {approx = true} : vector<16x1xf32> -> vector<16x1xf32>
    %116 = vector.broadcast %115 : vector<16x1xf32> to vector<16x16xf32>
    %117 = arith.mulf %112, %116 : vector<16x16xf32>
    %118 = vector.extract_strided_slice %55 {offsets = [0, 24], sizes = [16, 8], strides = [1, 1]} : vector<16x32xf32> to vector<16x8xf32>
    %cst_46 = arith.constant dense<0.000000e+00> : vector<16x8xf32>
    %119 = tpu.matmul %117, %118, %cst_46 {dimension_numbers = #tpu.dot_dimension_numbers<[1], [0], [0], [1], [0, 0, 1, 1], [], []>} : vector<16x16xf32>, vector<16x8xf32>, vector<16x8xf32> -> vector<16x8xf32>
    %120 = tpu.concatenate %71, %87, %103, %119 in 1 : vector<16x8xf32>, vector<16x8xf32>, vector<16x8xf32>, vector<16x8xf32> -> vector<16x32xf32>
    %cst_47 = arith.constant dense<0.000000e+00> : vector<16x32xf32>
    %121 = tpu.matmul %120, %45, %cst_47 {dimension_numbers = #tpu.dot_dimension_numbers<[1], [0], [0], [1], [0, 0, 1, 1], [], []>} : vector<16x32xf32>, vector<32x32xf32>, vector<16x32xf32> -> vector<16x32xf32>
    %122 = vector.broadcast %47 : vector<1x32xf32> to vector<16x32xf32>
    %123 = arith.addf %121, %122 : vector<16x32xf32>
    %124 = arith.addf %33, %123 : vector<16x32xf32>
    %125 = vector.extract_strided_slice %0 {offsets = [2, 0, 0], sizes = [1, 1, 32], strides = [1, 1, 1]} : vector<8x1x32xf32> to vector<1x1x32xf32>
    %126 = vector.shape_cast %125 : vector<1x1x32xf32> to vector<1x32xf32>
    %127 = vector.extract_strided_slice %0 {offsets = [3, 0, 0], sizes = [1, 1, 32], strides = [1, 1, 1]} : vector<8x1x32xf32> to vector<1x1x32xf32>
    %128 = vector.shape_cast %127 : vector<1x1x32xf32> to vector<1x32xf32>
    %cst_48 = arith.constant dense<0.000000e+00> : vector<16xf32>
    %129 = vector.multi_reduction <add>, %124, %cst_48 [1] : vector<16x32xf32> to vector<16xf32>
    %130 = vector.shape_cast %129 : vector<16xf32> to vector<16x1xf32>
    %cst_49 = arith.constant 3.200000e+01 : f32
    %131 = vector.broadcast %cst_49 : f32 to vector<16x1xf32>
    %132 = arith.divf %130, %131 : vector<16x1xf32>
    %133 = vector.broadcast %132 : vector<16x1xf32> to vector<16x32xf32>
    %134 = arith.subf %124, %133 : vector<16x32xf32>
    %135 = arith.mulf %134, %134 : vector<16x32xf32>
    %cst_50 = arith.constant dense<0.000000e+00> : vector<16xf32>
    %136 = vector.multi_reduction <add>, %135, %cst_50 [1] : vector<16x32xf32> to vector<16xf32>
    %137 = vector.shape_cast %136 : vector<16xf32> to vector<16x1xf32>
    %cst_51 = arith.constant 3.200000e+01 : f32
    %138 = vector.broadcast %cst_51 : f32 to vector<16x1xf32>
    %139 = arith.divf %137, %138 : vector<16x1xf32>
    %140 = vector.broadcast %132 : vector<16x1xf32> to vector<16x32xf32>
    %141 = arith.subf %124, %140 : vector<16x32xf32>
    %cst_52 = arith.constant 9.99999974E-6 : f32
    %142 = vector.broadcast %cst_52 : f32 to vector<16x1xf32>
    %143 = arith.addf %139, %142 : vector<16x1xf32>
    %144 = math.rsqrt %143 : vector<16x1xf32>
    %145 = vector.broadcast %144 : vector<16x1xf32> to vector<16x32xf32>
    %146 = arith.mulf %141, %145 : vector<16x32xf32>
    %147 = vector.broadcast %126 : vector<1x32xf32> to vector<16x32xf32>
    %148 = arith.mulf %146, %147 : vector<16x32xf32>
    %149 = vector.broadcast %128 : vector<1x32xf32> to vector<16x32xf32>
    %150 = arith.addf %148, %149 : vector<16x32xf32>
    %c0_53 = arith.constant 0 : index
    %c0_54 = arith.constant 0 : index
    %151 = vector.load %arg2[%c0_53, %c0_54] : memref<16x32xf32, #tpu.memory_space<vmem>>, vector<16x32xf32>
    %c0_55 = arith.constant 0 : index
    %c0_56 = arith.constant 0 : index
    %c0_57 = arith.constant 0 : index
    %152 = vector.load %arg4[%c0_55, %c0_56, %c0_57] : memref<1x16x16xf32, #tpu.memory_space<vmem>>, vector<1x16x16xf32>
    %153 = vector.shape_cast %152 : vector<1x16x16xf32> to vector<16x16xf32>
    %154 = vector.extract_strided_slice %1 {offsets = [1, 0, 0], sizes = [1, 32, 32], strides = [1, 1, 1]} : vector<2x32x32xf32> to vector<1x32x32xf32>
    %155 = vector.shape_cast %154 : vector<1x32x32xf32> to vector<32x32xf32>
    %156 = vector.extract_strided_slice %2 {offsets = [1, 0, 0], sizes = [1, 1, 32], strides = [1, 1, 1]} : vector<2x1x32xf32> to vector<1x1x32xf32>
    %157 = vector.shape_cast %156 : vector<1x1x32xf32> to vector<1x32xf32>
    %158 = vector.extract_strided_slice %3 {offsets = [1, 0, 0], sizes = [1, 32, 64], strides = [1, 1, 1]} : vector<2x32x64xf32> to vector<1x32x64xf32>
    %159 = vector.shape_cast %158 : vector<1x32x64xf32> to vector<32x64xf32>
    %160 = vector.extract_strided_slice %4 {offsets = [1, 0, 0], sizes = [1, 1, 64], strides = [1, 1, 1]} : vector<2x1x64xf32> to vector<1x1x64xf32>
    %161 = vector.shape_cast %160 : vector<1x1x64xf32> to vector<1x64xf32>
    %162 = vector.extract_strided_slice %5 {offsets = [1, 0, 0], sizes = [1, 32, 32], strides = [1, 1, 1]} : vector<2x32x32xf32> to vector<1x32x32xf32>
    %163 = vector.shape_cast %162 : vector<1x32x32xf32> to vector<32x32xf32>
    %164 = vector.extract_strided_slice %6 {offsets = [1, 0, 0], sizes = [1, 1, 32], strides = [1, 1, 1]} : vector<2x1x32xf32> to vector<1x1x32xf32>
    %165 = vector.shape_cast %164 : vector<1x1x32xf32> to vector<1x32xf32>
    %cst_58 = arith.constant dense<0.000000e+00> : vector<16x32xf32>
    %166 = tpu.matmul %150, %155, %cst_58 {dimension_numbers = #tpu.dot_dimension_numbers<[1], [0], [0], [1], [0, 0, 1, 1], [], []>} : vector<16x32xf32>, vector<32x32xf32>, vector<16x32xf32> -> vector<16x32xf32>
    %167 = vector.broadcast %157 : vector<1x32xf32> to vector<16x32xf32>
    %168 = arith.addf %166, %167 : vector<16x32xf32>
    %cst_59 = arith.constant dense<0.000000e+00> : vector<16x64xf32>
    %169 = tpu.matmul %151, %159, %cst_59 {dimension_numbers = #tpu.dot_dimension_numbers<[1], [0], [0], [1], [0, 0, 1, 1], [], []>} : vector<16x32xf32>, vector<32x64xf32>, vector<16x64xf32> -> vector<16x64xf32>
    %170 = vector.broadcast %161 : vector<1x64xf32> to vector<16x64xf32>
    %171 = arith.addf %169, %170 : vector<16x64xf32>
    %172 = vector.extract_strided_slice %171 {offsets = [0, 0], sizes = [16, 32], strides = [1, 1]} : vector<16x64xf32> to vector<16x32xf32>
    %173 = vector.extract_strided_slice %171 {offsets = [0, 32], sizes = [16, 32], strides = [1, 1]} : vector<16x64xf32> to vector<16x32xf32>
    %174 = vector.extract_strided_slice %168 {offsets = [0, 0], sizes = [16, 8], strides = [1, 1]} : vector<16x32xf32> to vector<16x8xf32>
    %175 = vector.extract_strided_slice %172 {offsets = [0, 0], sizes = [16, 8], strides = [1, 1]} : vector<16x32xf32> to vector<16x8xf32>
    %cst_60 = arith.constant dense<0.000000e+00> : vector<16x16xf32>
    %176 = tpu.matmul %174, %175, %cst_60 {dimension_numbers = #tpu.dot_dimension_numbers<[1], [1], [0], [0], [0, 0, 1, 0], [], []>} : vector<16x8xf32>, vector<16x8xf32>, vector<16x16xf32> -> vector<16x16xf32>
    %177 = arith.addf %176, %153 : vector<16x16xf32>
    %cst_61 = arith.constant dense<0xFF800000> : vector<16xf32>
    %178 = vector.multi_reduction <maximumf>, %177, %cst_61 [1] : vector<16x16xf32> to vector<16xf32>
    %179 = vector.shape_cast %178 : vector<16xf32> to vector<16x1xf32>
    %180 = vector.broadcast %179 : vector<16x1xf32> to vector<16x16xf32>
    %181 = arith.subf %177, %180 : vector<16x16xf32>
    %182 = math.exp %181 : vector<16x16xf32>
    %cst_62 = arith.constant dense<0.000000e+00> : vector<16xf32>
    %183 = vector.multi_reduction <add>, %182, %cst_62 [1] : vector<16x16xf32> to vector<16xf32>
    %184 = vector.shape_cast %183 : vector<16xf32> to vector<16x1xf32>
    %185 = tpu.reciprocal %184 {approx = true} : vector<16x1xf32> -> vector<16x1xf32>
    %186 = vector.broadcast %185 : vector<16x1xf32> to vector<16x16xf32>
    %187 = arith.mulf %182, %186 : vector<16x16xf32>
    %188 = vector.extract_strided_slice %173 {offsets = [0, 0], sizes = [16, 8], strides = [1, 1]} : vector<16x32xf32> to vector<16x8xf32>
    %cst_63 = arith.constant dense<0.000000e+00> : vector<16x8xf32>
    %189 = tpu.matmul %187, %188, %cst_63 {dimension_numbers = #tpu.dot_dimension_numbers<[1], [0], [0], [1], [0, 0, 1, 1], [], []>} : vector<16x16xf32>, vector<16x8xf32>, vector<16x8xf32> -> vector<16x8xf32>
    %190 = vector.extract_strided_slice %168 {offsets = [0, 8], sizes = [16, 8], strides = [1, 1]} : vector<16x32xf32> to vector<16x8xf32>
    %191 = vector.extract_strided_slice %172 {offsets = [0, 8], sizes = [16, 8], strides = [1, 1]} : vector<16x32xf32> to vector<16x8xf32>
    %cst_64 = arith.constant dense<0.000000e+00> : vector<16x16xf32>
    %192 = tpu.matmul %190, %191, %cst_64 {dimension_numbers = #tpu.dot_dimension_numbers<[1], [1], [0], [0], [0, 0, 1, 0], [], []>} : vector<16x8xf32>, vector<16x8xf32>, vector<16x16xf32> -> vector<16x16xf32>
    %193 = arith.addf %192, %153 : vector<16x16xf32>
    %cst_65 = arith.constant dense<0xFF800000> : vector<16xf32>
    %194 = vector.multi_reduction <maximumf>, %193, %cst_65 [1] : vector<16x16xf32> to vector<16xf32>
    %195 = vector.shape_cast %194 : vector<16xf32> to vector<16x1xf32>
    %196 = vector.broadcast %195 : vector<16x1xf32> to vector<16x16xf32>
    %197 = arith.subf %193, %196 : vector<16x16xf32>
    %198 = math.exp %197 : vector<16x16xf32>
    %cst_66 = arith.constant dense<0.000000e+00> : vector<16xf32>
    %199 = vector.multi_reduction <add>, %198, %cst_66 [1] : vector<16x16xf32> to vector<16xf32>
    %200 = vector.shape_cast %199 : vector<16xf32> to vector<16x1xf32>
    %201 = tpu.reciprocal %200 {approx = true} : vector<16x1xf32> -> vector<16x1xf32>
    %202 = vector.broadcast %201 : vector<16x1xf32> to vector<16x16xf32>
    %203 = arith.mulf %198, %202 : vector<16x16xf32>
    %204 = vector.extract_strided_slice %173 {offsets = [0, 8], sizes = [16, 8], strides = [1, 1]} : vector<16x32xf32> to vector<16x8xf32>
    %cst_67 = arith.constant dense<0.000000e+00> : vector<16x8xf32>
    %205 = tpu.matmul %203, %204, %cst_67 {dimension_numbers = #tpu.dot_dimension_numbers<[1], [0], [0], [1], [0, 0, 1, 1], [], []>} : vector<16x16xf32>, vector<16x8xf32>, vector<16x8xf32> -> vector<16x8xf32>
    %206 = vector.extract_strided_slice %168 {offsets = [0, 16], sizes = [16, 8], strides = [1, 1]} : vector<16x32xf32> to vector<16x8xf32>
    %207 = vector.extract_strided_slice %172 {offsets = [0, 16], sizes = [16, 8], strides = [1, 1]} : vector<16x32xf32> to vector<16x8xf32>
    %cst_68 = arith.constant dense<0.000000e+00> : vector<16x16xf32>
    %208 = tpu.matmul %206, %207, %cst_68 {dimension_numbers = #tpu.dot_dimension_numbers<[1], [1], [0], [0], [0, 0, 1, 0], [], []>} : vector<16x8xf32>, vector<16x8xf32>, vector<16x16xf32> -> vector<16x16xf32>
    %209 = arith.addf %208, %153 : vector<16x16xf32>
    %cst_69 = arith.constant dense<0xFF800000> : vector<16xf32>
    %210 = vector.multi_reduction <maximumf>, %209, %cst_69 [1] : vector<16x16xf32> to vector<16xf32>
    %211 = vector.shape_cast %210 : vector<16xf32> to vector<16x1xf32>
    %212 = vector.broadcast %211 : vector<16x1xf32> to vector<16x16xf32>
    %213 = arith.subf %209, %212 : vector<16x16xf32>
    %214 = math.exp %213 : vector<16x16xf32>
    %cst_70 = arith.constant dense<0.000000e+00> : vector<16xf32>
    %215 = vector.multi_reduction <add>, %214, %cst_70 [1] : vector<16x16xf32> to vector<16xf32>
    %216 = vector.shape_cast %215 : vector<16xf32> to vector<16x1xf32>
    %217 = tpu.reciprocal %216 {approx = true} : vector<16x1xf32> -> vector<16x1xf32>
    %218 = vector.broadcast %217 : vector<16x1xf32> to vector<16x16xf32>
    %219 = arith.mulf %214, %218 : vector<16x16xf32>
    %220 = vector.extract_strided_slice %173 {offsets = [0, 16], sizes = [16, 8], strides = [1, 1]} : vector<16x32xf32> to vector<16x8xf32>
    %cst_71 = arith.constant dense<0.000000e+00> : vector<16x8xf32>
    %221 = tpu.matmul %219, %220, %cst_71 {dimension_numbers = #tpu.dot_dimension_numbers<[1], [0], [0], [1], [0, 0, 1, 1], [], []>} : vector<16x16xf32>, vector<16x8xf32>, vector<16x8xf32> -> vector<16x8xf32>
    %222 = vector.extract_strided_slice %168 {offsets = [0, 24], sizes = [16, 8], strides = [1, 1]} : vector<16x32xf32> to vector<16x8xf32>
    %223 = vector.extract_strided_slice %172 {offsets = [0, 24], sizes = [16, 8], strides = [1, 1]} : vector<16x32xf32> to vector<16x8xf32>
    %cst_72 = arith.constant dense<0.000000e+00> : vector<16x16xf32>
    %224 = tpu.matmul %222, %223, %cst_72 {dimension_numbers = #tpu.dot_dimension_numbers<[1], [1], [0], [0], [0, 0, 1, 0], [], []>} : vector<16x8xf32>, vector<16x8xf32>, vector<16x16xf32> -> vector<16x16xf32>
    %225 = arith.addf %224, %153 : vector<16x16xf32>
    %cst_73 = arith.constant dense<0xFF800000> : vector<16xf32>
    %226 = vector.multi_reduction <maximumf>, %225, %cst_73 [1] : vector<16x16xf32> to vector<16xf32>
    %227 = vector.shape_cast %226 : vector<16xf32> to vector<16x1xf32>
    %228 = vector.broadcast %227 : vector<16x1xf32> to vector<16x16xf32>
    %229 = arith.subf %225, %228 : vector<16x16xf32>
    %230 = math.exp %229 : vector<16x16xf32>
    %cst_74 = arith.constant dense<0.000000e+00> : vector<16xf32>
    %231 = vector.multi_reduction <add>, %230, %cst_74 [1] : vector<16x16xf32> to vector<16xf32>
    %232 = vector.shape_cast %231 : vector<16xf32> to vector<16x1xf32>
    %233 = tpu.reciprocal %232 {approx = true} : vector<16x1xf32> -> vector<16x1xf32>
    %234 = vector.broadcast %233 : vector<16x1xf32> to vector<16x16xf32>
    %235 = arith.mulf %230, %234 : vector<16x16xf32>
    %236 = vector.extract_strided_slice %173 {offsets = [0, 24], sizes = [16, 8], strides = [1, 1]} : vector<16x32xf32> to vector<16x8xf32>
    %cst_75 = arith.constant dense<0.000000e+00> : vector<16x8xf32>
    %237 = tpu.matmul %235, %236, %cst_75 {dimension_numbers = #tpu.dot_dimension_numbers<[1], [0], [0], [1], [0, 0, 1, 1], [], []>} : vector<16x16xf32>, vector<16x8xf32>, vector<16x8xf32> -> vector<16x8xf32>
    %238 = tpu.concatenate %189, %205, %221, %237 in 1 : vector<16x8xf32>, vector<16x8xf32>, vector<16x8xf32>, vector<16x8xf32> -> vector<16x32xf32>
    %cst_76 = arith.constant dense<0.000000e+00> : vector<16x32xf32>
    %239 = tpu.matmul %238, %163, %cst_76 {dimension_numbers = #tpu.dot_dimension_numbers<[1], [0], [0], [1], [0, 0, 1, 1], [], []>} : vector<16x32xf32>, vector<32x32xf32>, vector<16x32xf32> -> vector<16x32xf32>
    %240 = vector.broadcast %165 : vector<1x32xf32> to vector<16x32xf32>
    %241 = arith.addf %239, %240 : vector<16x32xf32>
    %242 = arith.addf %150, %241 : vector<16x32xf32>
    %243 = vector.extract_strided_slice %0 {offsets = [4, 0, 0], sizes = [1, 1, 32], strides = [1, 1, 1]} : vector<8x1x32xf32> to vector<1x1x32xf32>
    %244 = vector.shape_cast %243 : vector<1x1x32xf32> to vector<1x32xf32>
    %245 = vector.extract_strided_slice %0 {offsets = [5, 0, 0], sizes = [1, 1, 32], strides = [1, 1, 1]} : vector<8x1x32xf32> to vector<1x1x32xf32>
    %246 = vector.shape_cast %245 : vector<1x1x32xf32> to vector<1x32xf32>
    %cst_77 = arith.constant dense<0.000000e+00> : vector<16xf32>
    %247 = vector.multi_reduction <add>, %242, %cst_77 [1] : vector<16x32xf32> to vector<16xf32>
    %248 = vector.shape_cast %247 : vector<16xf32> to vector<16x1xf32>
    %cst_78 = arith.constant 3.200000e+01 : f32
    %249 = vector.broadcast %cst_78 : f32 to vector<16x1xf32>
    %250 = arith.divf %248, %249 : vector<16x1xf32>
    %251 = vector.broadcast %250 : vector<16x1xf32> to vector<16x32xf32>
    %252 = arith.subf %242, %251 : vector<16x32xf32>
    %253 = arith.mulf %252, %252 : vector<16x32xf32>
    %cst_79 = arith.constant dense<0.000000e+00> : vector<16xf32>
    %254 = vector.multi_reduction <add>, %253, %cst_79 [1] : vector<16x32xf32> to vector<16xf32>
    %255 = vector.shape_cast %254 : vector<16xf32> to vector<16x1xf32>
    %cst_80 = arith.constant 3.200000e+01 : f32
    %256 = vector.broadcast %cst_80 : f32 to vector<16x1xf32>
    %257 = arith.divf %255, %256 : vector<16x1xf32>
    %258 = vector.broadcast %250 : vector<16x1xf32> to vector<16x32xf32>
    %259 = arith.subf %242, %258 : vector<16x32xf32>
    %cst_81 = arith.constant 9.99999974E-6 : f32
    %260 = vector.broadcast %cst_81 : f32 to vector<16x1xf32>
    %261 = arith.addf %257, %260 : vector<16x1xf32>
    %262 = math.rsqrt %261 : vector<16x1xf32>
    %263 = vector.broadcast %262 : vector<16x1xf32> to vector<16x32xf32>
    %264 = arith.mulf %259, %263 : vector<16x32xf32>
    %265 = vector.broadcast %244 : vector<1x32xf32> to vector<16x32xf32>
    %266 = arith.mulf %264, %265 : vector<16x32xf32>
    %267 = vector.broadcast %246 : vector<1x32xf32> to vector<16x32xf32>
    %268 = arith.addf %266, %267 : vector<16x32xf32>
    %c0_82 = arith.constant 0 : index
    %c0_83 = arith.constant 0 : index
    %269 = vector.load %arg12[%c0_82, %c0_83] : memref<32x64xf32, #tpu.memory_space<vmem>>, vector<32x64xf32>
    %cst_84 = arith.constant dense<0.000000e+00> : vector<16x64xf32>
    %270 = tpu.matmul %268, %269, %cst_84 {dimension_numbers = #tpu.dot_dimension_numbers<[1], [0], [0], [1], [0, 0, 1, 1], [], []>} : vector<16x32xf32>, vector<32x64xf32>, vector<16x64xf32> -> vector<16x64xf32>
    %c0_85 = arith.constant 0 : index
    %c0_86 = arith.constant 0 : index
    %271 = vector.load %arg13[%c0_85, %c0_86] : memref<1x64xf32, #tpu.memory_space<vmem>>, vector<1x64xf32>
    %272 = vector.broadcast %271 : vector<1x64xf32> to vector<16x64xf32>
    %273 = arith.addf %270, %272 : vector<16x64xf32>
    %cst_87 = arith.constant 5.000000e-01 : f32
    %274 = vector.broadcast %cst_87 : f32 to vector<16x64xf32>
    %275 = arith.mulf %274, %273 : vector<16x64xf32>
    %cst_88 = arith.constant 4.471500e-02 : f32
    %276 = vector.broadcast %cst_88 : f32 to vector<16x64xf32>
    %277 = arith.mulf %276, %273 : vector<16x64xf32>
    %278 = arith.mulf %277, %273 : vector<16x64xf32>
    %279 = arith.mulf %278, %273 : vector<16x64xf32>
    %280 = arith.addf %273, %279 : vector<16x64xf32>
    %cst_89 = arith.constant 0.797884583 : f32
    %281 = vector.broadcast %cst_89 : f32 to vector<16x64xf32>
    %282 = arith.mulf %281, %280 : vector<16x64xf32>
    %283 = math.tanh %282 : vector<16x64xf32>
    %cst_90 = arith.constant 1.000000e+00 : f32
    %284 = vector.broadcast %cst_90 : f32 to vector<16x64xf32>
    %285 = arith.addf %284, %283 : vector<16x64xf32>
    %286 = arith.mulf %275, %285 : vector<16x64xf32>
    %c0_91 = arith.constant 0 : index
    %c0_92 = arith.constant 0 : index
    %287 = vector.load %arg14[%c0_91, %c0_92] : memref<64x32xf32, #tpu.memory_space<vmem>>, vector<64x32xf32>
    %cst_93 = arith.constant dense<0.000000e+00> : vector<16x32xf32>
    %288 = tpu.matmul %286, %287, %cst_93 {dimension_numbers = #tpu.dot_dimension_numbers<[1], [0], [0], [1], [0, 0, 1, 1], [], []>} : vector<16x64xf32>, vector<64x32xf32>, vector<16x32xf32> -> vector<16x32xf32>
    %c0_94 = arith.constant 0 : index
    %c0_95 = arith.constant 0 : index
    %289 = vector.load %arg15[%c0_94, %c0_95] : memref<1x32xf32, #tpu.memory_space<vmem>>, vector<1x32xf32>
    %290 = vector.broadcast %289 : vector<1x32xf32> to vector<16x32xf32>
    %291 = arith.addf %288, %290 : vector<16x32xf32>
    %292 = arith.addf %268, %291 : vector<16x32xf32>
    %293 = vector.extract_strided_slice %0 {offsets = [6, 0, 0], sizes = [1, 1, 32], strides = [1, 1, 1]} : vector<8x1x32xf32> to vector<1x1x32xf32>
    %294 = vector.shape_cast %293 : vector<1x1x32xf32> to vector<1x32xf32>
    %295 = vector.extract_strided_slice %0 {offsets = [7, 0, 0], sizes = [1, 1, 32], strides = [1, 1, 1]} : vector<8x1x32xf32> to vector<1x1x32xf32>
    %296 = vector.shape_cast %295 : vector<1x1x32xf32> to vector<1x32xf32>
    %cst_96 = arith.constant dense<0.000000e+00> : vector<16xf32>
    %297 = vector.multi_reduction <add>, %292, %cst_96 [1] : vector<16x32xf32> to vector<16xf32>
    %298 = vector.shape_cast %297 : vector<16xf32> to vector<16x1xf32>
    %cst_97 = arith.constant 3.200000e+01 : f32
    %299 = vector.broadcast %cst_97 : f32 to vector<16x1xf32>
    %300 = arith.divf %298, %299 : vector<16x1xf32>
    %301 = vector.broadcast %300 : vector<16x1xf32> to vector<16x32xf32>
    %302 = arith.subf %292, %301 : vector<16x32xf32>
    %303 = arith.mulf %302, %302 : vector<16x32xf32>
    %cst_98 = arith.constant dense<0.000000e+00> : vector<16xf32>
    %304 = vector.multi_reduction <add>, %303, %cst_98 [1] : vector<16x32xf32> to vector<16xf32>
    %305 = vector.shape_cast %304 : vector<16xf32> to vector<16x1xf32>
    %cst_99 = arith.constant 3.200000e+01 : f32
    %306 = vector.broadcast %cst_99 : f32 to vector<16x1xf32>
    %307 = arith.divf %305, %306 : vector<16x1xf32>
    %308 = vector.broadcast %300 : vector<16x1xf32> to vector<16x32xf32>
    %309 = arith.subf %292, %308 : vector<16x32xf32>
    %cst_100 = arith.constant 9.99999974E-6 : f32
    %310 = vector.broadcast %cst_100 : f32 to vector<16x1xf32>
    %311 = arith.addf %307, %310 : vector<16x1xf32>
    %312 = math.rsqrt %311 : vector<16x1xf32>
    %313 = vector.broadcast %312 : vector<16x1xf32> to vector<16x32xf32>
    %314 = arith.mulf %309, %313 : vector<16x32xf32>
    %315 = vector.broadcast %294 : vector<1x32xf32> to vector<16x32xf32>
    %316 = arith.mulf %314, %315 : vector<16x32xf32>
    %317 = vector.broadcast %296 : vector<1x32xf32> to vector<16x32xf32>
    %318 = arith.addf %316, %317 : vector<16x32xf32>
    %c0_101 = arith.constant 0 : index
    %c0_102 = arith.constant 0 : index
    %319 = vector.load %arg16[%c0_101, %c0_102] : memref<16x32xf32, #tpu.memory_space<vmem>>, vector<16x32xf32>
    tpu.vector_store %arg16[%c0_101, %c0_102], %318 {strides = array<i32>} : memref<16x32xf32, #tpu.memory_space<vmem>>, vector<16x32xf32>,
    return
  }
  func.func @transform_0(%arg0: i32) -> (i32, i32) {
    %c0_i32 = arith.constant 0 : i32
    %c0_i32_0 = arith.constant 0 : i32
    return %arg0, %c0_i32 : i32, i32
  }
  func.func @transform_1(%arg0: i32) -> (i32, i32) {
    %c0_i32 = arith.constant 0 : i32
    %c0_i32_0 = arith.constant 0 : i32
    return %arg0, %c0_i32 : i32, i32
  }
  func.func @transform_2(%arg0: i32) -> (i32, i32, i32) {
    %c0_i32 = arith.constant 0 : i32
    %c0_i32_0 = arith.constant 0 : i32
    %c0_i32_1 = arith.constant 0 : i32
    return %arg0, %c0_i32, %c0_i32_0 : i32, i32, i32
  }
  func.func @transform_3(%arg0: i32) -> (i32, i32, i32) {
    %c0_i32 = arith.constant 0 : i32
    %c0_i32_0 = arith.constant 0 : i32
    %c0_i32_1 = arith.constant 0 : i32
    return %arg0, %c0_i32, %c0_i32_0 : i32, i32, i32
  }
  func.func @transform_4(%arg0: i32) -> (i32, i32, i32) {
    %c0_i32 = arith.constant 0 : i32
    %c0_i32_0 = arith.constant 0 : i32
    %c0_i32_1 = arith.constant 0 : i32
    %c0_i32_2 = arith.constant 0 : i32
    return %c0_i32, %c0_i32_0, %c0_i32_1 : i32, i32, i32
  }
  func.func @transform_5(%arg0: i32) -> (i32, i32, i32) {
    %c0_i32 = arith.constant 0 : i32
    %c0_i32_0 = arith.constant 0 : i32
    %c0_i32_1 = arith.constant 0 : i32
    %c0_i32_2 = arith.constant 0 : i32
    return %c0_i32, %c0_i32_0, %c0_i32_1 : i32, i32, i32
  }
  func.func @transform_6(%arg0: i32) -> (i32, i32, i32) {
    %c0_i32 = arith.constant 0 : i32
    %c0_i32_0 = arith.constant 0 : i32
    %c0_i32_1 = arith.constant 0 : i32
    %c0_i32_2 = arith.constant 0 : i32
    return %c0_i32, %c0_i32_0, %c0_i32_1 : i32, i32, i32
  }
  func.func @transform_7(%arg0: i32) -> (i32, i32, i32) {
    %c0_i32 = arith.constant 0 : i32
    %c0_i32_0 = arith.constant 0 : i32
    %c0_i32_1 = arith.constant 0 : i32
    %c0_i32_2 = arith.constant 0 : i32
    return %c0_i32, %c0_i32_0, %c0_i32_1 : i32, i32, i32
  }
  func.func @transform_8(%arg0: i32) -> (i32, i32, i32) {
    %c0_i32 = arith.constant 0 : i32
    %c0_i32_0 = arith.constant 0 : i32
    %c0_i32_1 = arith.constant 0 : i32
    %c0_i32_2 = arith.constant 0 : i32
    return %c0_i32, %c0_i32_0, %c0_i32_1 : i32, i32, i32
  }
  func.func @transform_9(%arg0: i32) -> (i32, i32, i32) {
    %c0_i32 = arith.constant 0 : i32
    %c0_i32_0 = arith.constant 0 : i32
    %c0_i32_1 = arith.constant 0 : i32
    %c0_i32_2 = arith.constant 0 : i32
    return %c0_i32, %c0_i32_0, %c0_i32_1 : i32, i32, i32
  }
  func.func @transform_10(%arg0: i32) -> (i32, i32, i32) {
    %c0_i32 = arith.constant 0 : i32
    %c0_i32_0 = arith.constant 0 : i32
    %c0_i32_1 = arith.constant 0 : i32
    %c0_i32_2 = arith.constant 0 : i32
    return %c0_i32, %c0_i32_0, %c0_i32_1 : i32, i32, i32
  }
  func.func @transform_11(%arg0: i32) -> (i32, i32) {
    %c0_i32 = arith.constant 0 : i32
    %c0_i32_0 = arith.constant 0 : i32
    %c0_i32_1 = arith.constant 0 : i32
    return %c0_i32, %c0_i32_0 : i32, i32
  }
  func.func @transform_12(%arg0: i32) -> (i32, i32) {
    %c0_i32 = arith.constant 0 : i32
    %c0_i32_0 = arith.constant 0 : i32
    %c0_i32_1 = arith.constant 0 : i32
    return %c0_i32, %c0_i32_0 : i32, i32
  }
  func.func @transform_13(%arg0: i32) -> (i32, i32) {
    %c0_i32 = arith.constant 0 : i32
    %c0_i32_0 = arith.constant 0 : i32
    %c0_i32_1 = arith.constant 0 : i32
    return %c0_i32, %c0_i32_0 : i32, i32
  }
  func.func @transform_14(%arg0: i32) -> (i32, i32) {
    %c0_i32 = arith.constant 0 : i32
    %c0_i32_0 = arith.constant 0 : i32
    %c0_i32_1 = arith.constant 0 : i32
    return %c0_i32, %c0_i32_0 : i32, i32
  }
  func.func @transform_15(%arg0: i32) -> (i32, i32) {
    %c0_i32 = arith.constant 0 : i32
    %c0_i32_0 = arith.constant 0 : i32
    return %arg0, %c0_i32 : i32, i32
  }
}

</mosaic_0001>

<llo_original>
// kernel: parabart_decoder_forward.1
$region0: #{parabart_decoder_forward.1}
  #allocation0 [shape = 'u32[]', space=smem, size = 0x4, offset = 0x4, fixed_abs, tag = 'smem constant byte address 0x4 - core index']
  #allocation1 [shape = 'u32[72,128]{1,0:T(1,128)}', space=vmem, size = 0x9000, scoped, tag = 'internal scratch']
  %s0 = inlined_call_operand.vmem [shape: f32[16,32], index: 0, kind: input, shape index: {}]
  %s1 = inlined_call_operand.vmem [shape: f32[16,32], index: 1, kind: input, shape index: {}]
  %s2 = inlined_call_operand.vmem [shape: f32[1,16,16], index: 2, kind: input, shape index: {}]
  %s3 = inlined_call_operand.vmem [shape: f32[1,16,16], index: 3, kind: input, shape index: {}]
  %s4 = inlined_call_operand.vmem [shape: f32[2,32,32], index: 4, kind: input, shape index: {}]
  %s5 = inlined_call_operand.vmem [shape: f32[2,1,32], index: 5, kind: input, shape index: {}]
  %s6 = inlined_call_operand.vmem [shape: f32[2,32,64], index: 6, kind: input, shape index: {}]
  %s7 = inlined_call_operand.vmem [shape: f32[2,1,64], index: 7, kind: input, shape index: {}]
  %s8 = inlined_call_operand.vmem [shape: f32[2,32,32], index: 8, kind: input, shape index: {}]
  %s9 = inlined_call_operand.vmem [shape: f32[2,1,32], index: 9, kind: input, shape index: {}]
  %s10 = inlined_call_operand.vmem [shape: f32[8,1,32], index: 10, kind: input, shape index: {}]
  %s11 = inlined_call_operand.vmem [shape: f32[32,64], index: 11, kind: input, shape index: {}]
  %s12 = inlined_call_operand.vmem [shape: f32[1,64], index: 12, kind: input, shape index: {}]
  %s13 = inlined_call_operand.vmem [shape: f32[64,32], index: 13, kind: input, shape index: {}]
  %s14 = inlined_call_operand.vmem [shape: f32[1,32], index: 14, kind: input, shape index: {}]
  %s15 = inlined_call_operand.hbm [shape: f32[16,32], index: 15, kind: output, shape index: {}]
  %s16 = sld [smem:[#allocation0]]
  $region70: #{parabart_decoder_forward.1} parent=0
    _
  %s18 = ssub.s32 1, %s16
  %s19 = scalar_select 0, %s18, %s16
  $region1: #{parabart_decoder_forward.1} parent=0
    #allocation2 [shape = 'u8[8192]{0}', space=vmem, size = 0x2000, scoped, tag = 'output window, operand 0, single buffered']
    #allocation3 [shape = 's32[1]{0}', space=sflag, size = 0x4, scoped, tag = 'scoped memory for parabart_decoder_forward.1']
    %20 = vsyncpa [#allocation3], 0
    // Predicated region
    $region2: #{parabart_decoder_forward.1} parent=1 // pred_check
      _
    $region3: #{parabart_decoder_forward.1} parent=1 // pred_check_branch
      %22 = sbr.rel (0) target = $region5
    $region4: #{parabart_decoder_forward.1} parent=1 // pred_region
      _
    $region5: #{parabart_decoder_forward.1} parent=1 // pred_fallthru
      _
    // Predicated region
    $region6: #{parabart_decoder_forward.1} parent=1 // pred_check
      _
    $region7: #{parabart_decoder_forward.1} parent=1 // pred_check_branch
      %24 = sbr.rel (0) target = $region9
    $region8: #{parabart_decoder_forward.1} parent=1 // pred_region
      _
    $region9: #{parabart_decoder_forward.1} parent=1 // pred_fallthru
      _
    // Predicated region
    $region10: #{parabart_decoder_forward.1} parent=1 // pred_check
      _
    $region11: #{parabart_decoder_forward.1} parent=1 // pred_check_branch
      %26 = sbr.rel (0) target = $region13
    $region12: #{parabart_decoder_forward.1} parent=1 // pred_region
      _
    $region13: #{parabart_decoder_forward.1} parent=1 // pred_fallthru
      _
    // Predicated region
    $region14: #{parabart_decoder_forward.1} parent=1 // pred_check
      _
    $region15: #{parabart_decoder_forward.1} parent=1 // pred_check_branch
      %28 = sbr.rel (0) target = $region17
    $region16: #{parabart_decoder_forward.1} parent=1 // pred_region
      _
    $region17: #{parabart_decoder_forward.1} parent=1 // pred_fallthru
      _
    // Predicated region
    $region18: #{parabart_decoder_forward.1} parent=1 // pred_check
      _
    $region19: #{parabart_decoder_forward.1} parent=1 // pred_check_branch
      %30 = sbr.rel (0) target = $region21
    $region20: #{parabart_decoder_forward.1} parent=1 // pred_region
      _
    $region21: #{parabart_decoder_forward.1} parent=1 // pred_fallthru
      _
    // Predicated region
    $region22: #{parabart_decoder_forward.1} parent=1 // pred_check
      _
    $region23: #{parabart_decoder_forward.1} parent=1 // pred_check_branch
      %32 = sbr.rel (0) target = $region25
    $region24: #{parabart_decoder_forward.1} parent=1 // pred_region
      _
    $region25: #{parabart_decoder_forward.1} parent=1 // pred_fallthru
      _
    // Predicated region
    $region26: #{parabart_decoder_forward.1} parent=1 // pred_check
      _
    $region27: #{parabart_decoder_forward.1} parent=1 // pred_check_branch
      %34 = sbr.rel (0) target = $region29
    $region28: #{parabart_decoder_forward.1} parent=1 // pred_region
      _
    $region29: #{parabart_decoder_forward.1} parent=1 // pred_fallthru
      _
    // Predicated region
    $region30: #{parabart_decoder_forward.1} parent=1 // pred_check
      _
    $region31: #{parabart_decoder_forward.1} parent=1 // pred_check_branch
      %36 = sbr.rel (0) target = $region33
    $region32: #{parabart_decoder_forward.1} parent=1 // pred_region
      _
    $region33: #{parabart_decoder_forward.1} parent=1 // pred_fallthru
      _
    // Predicated region
    $region34: #{parabart_decoder_forward.1} parent=1 // pred_check
      _
    $region35: #{parabart_decoder_forward.1} parent=1 // pred_check_branch
      %38 = sbr.rel (0) target = $region37
    $region36: #{parabart_decoder_forward.1} parent=1 // pred_region
      _
    $region37: #{parabart_decoder_forward.1} parent=1 // pred_fallthru
      _
    // Predicated region
    $region38: #{parabart_decoder_forward.1} parent=1 // pred_check
      _
    $region39: #{parabart_decoder_forward.1} parent=1 // pred_check_branch
      %40 = sbr.rel (0) target = $region41
    $region40: #{parabart_decoder_forward.1} parent=1 // pred_region
      _
    $region41: #{parabart_decoder_forward.1} parent=1 // pred_fallthru
      _
    // Predicated region
    $region42: #{parabart_decoder_forward.1} parent=1 // pred_check
      _
    $region43: #{parabart_decoder_forward.1} parent=1 // pred_check_branch
      %42 = sbr.rel (0) target = $region45
    $region44: #{parabart_decoder_forward.1} parent=1 // pred_region
      _
    $region45: #{parabart_decoder_forward.1} parent=1 // pred_fallthru
      _
    // Predicated region
    $region46: #{parabart_decoder_forward.1} parent=1 // pred_check
      _
    $region47: #{parabart_decoder_forward.1} parent=1 // pred_check_branch
      %44 = sbr.rel (0) target = $region49
    $region48: #{parabart_decoder_forward.1} parent=1 // pred_region
      _
    $region49: #{parabart_decoder_forward.1} parent=1 // pred_fallthru
      _
    // Predicated region
    $region50: #{parabart_decoder_forward.1} parent=1 // pred_check
      _
    $region51: #{parabart_decoder_forward.1} parent=1 // pred_check_branch
      %46 = sbr.rel (0) target = $region53
    $region52: #{parabart_decoder_forward.1} parent=1 // pred_region
      _
    $region53: #{parabart_decoder_forward.1} parent=1 // pred_fallthru
      _
    // Predicated region
    $region54: #{parabart_decoder_forward.1} parent=1 // pred_check
      _
    $region55: #{parabart_decoder_forward.1} parent=1 // pred_check_branch
      %48 = sbr.rel (0) target = $region57
    $region56: #{parabart_decoder_forward.1} parent=1 // pred_region
      _
    $region57: #{parabart_decoder_forward.1} parent=1 // pred_fallthru
      _
    // Predicated region
    $region58: #{parabart_decoder_forward.1} parent=1 // pred_check
      _
    $region59: #{parabart_decoder_forward.1} parent=1 // pred_check_branch
      %50 = sbr.rel (0) target = $region61
    $region60: #{parabart_decoder_forward.1} parent=1 // pred_region
      _
    $region61: #{parabart_decoder_forward.1} parent=1 // pred_fallthru
      _
    %v51 = vld [vmem:[%s10] sm:$0x1]
    %v52 = vld [vmem:[%s10 + $0x1] sm:$0x1]
    %v53 = vld [vmem:[%s10 + $0x2] sm:$0x1]
    %v54 = vld [vmem:[%s10 + $0x3] sm:$0x1]
    %v55 = vld [vmem:[%s10 + $0x4] sm:$0x1]
    %v56 = vld [vmem:[%s10 + $0x5] sm:$0x1]
    %v57 = vld [vmem:[%s10 + $0x6] sm:$0x1]
    %v58 = vld [vmem:[%s10 + $0x7] sm:$0x1]
    %v59 = vld [vmem:[%s4] sm:$0xff]
    %v60 = vld [vmem:[%s4 + $0x8] sm:$0xff]
    %v61 = vld [vmem:[%s4 + $0x10] sm:$0xff]
    %v62 = vld [vmem:[%s4 + $0x18] sm:$0xff]
    %v63 = vld [vmem:[%s4 + $0x20] sm:$0xff]
    %v64 = vld [vmem:[%s4 + $0x28] sm:$0xff]
    %v65 = vld [vmem:[%s4 + $0x30] sm:$0xff]
    %v66 = vld [vmem:[%s4 + $0x38] sm:$0xff]
    %v67 = vld [vmem:[%s5] sm:$0x1]
    %v68 = vld [vmem:[%s5 + $0x1] sm:$0x1]
    %v69 = vld [vmem:[%s6] sm:$0xff]
    %v70 = vld [vmem:[%s6 + $0x8] sm:$0xff]
    %v71 = vld [vmem:[%s6 + $0x10] sm:$0xff]
    %v72 = vld [vmem:[%s6 + $0x18] sm:$0xff]
    %v73 = vld [vmem:[%s6 + $0x20] sm:$0xff]
    %v74 = vld [vmem:[%s6 + $0x28] sm:$0xff]
    %v75 = vld [vmem:[%s6 + $0x30] sm:$0xff]
    %v76 = vld [vmem:[%s6 + $0x38] sm:$0xff]
    %v77 = vld [vmem:[%s7] sm:$0x1]
    %v78 = vld [vmem:[%s7 + $0x1] sm:$0x1]
    %v79 = vld [vmem:[%s8] sm:$0xff]
    %v80 = vld [vmem:[%s8 + $0x8] sm:$0xff]
    %v81 = vld [vmem:[%s8 + $0x10] sm:$0xff]
    %v82 = vld [vmem:[%s8 + $0x18] sm:$0xff]
    %v83 = vld [vmem:[%s8 + $0x20] sm:$0xff]
    %v84 = vld [vmem:[%s8 + $0x28] sm:$0xff]
    %v85 = vld [vmem:[%s8 + $0x30] sm:$0xff]
    %v86 = vld [vmem:[%s8 + $0x38] sm:$0xff]
    %v87 = vld [vmem:[%s9] sm:$0x1]
    %v88 = vld [vmem:[%s9 + $0x1] sm:$0x1]
    %v89 = vld [vmem:[%s0] sm:$0xff]
    %v90 = vld [vmem:[%s0 + $0x8] sm:$0xff]
    %vm91 = vcmask 261120
    %v92 = vsel %vm91, %v89, 0.0
    %93 = vadd.xlane.f32.xlu0 %v92
    %v94 = vpop.xlane.xlu0 %93
    %v95 = vsel %vm91, %v90, 0.0
    %96 = vadd.xlane.f32.xlu0 %v95
    %v97 = vpop.xlane.xlu0 %96
    %v98 = vrcp.pop 32.0
    %v99 = vmul.f32 32.0, %v98
    %v100 = vsub.f32 1.0, %v99
    %v101 = vmul.f32 %v98, %v100
    %v102 = vadd.f32 %v98, %v101
    %vm103 = vweird.f32 %v98
    %v104 = vsel %vm103, %v98, %v102
    %v105 = vmul.f32 %v94, %v104
    %v106 = vmul.f32 %v97, %v104
    %v107 = vsub.f32 %v89, %v105
    %v108 = vsub.f32 %v90, %v106
    %v109 = vmul.f32 %v107, %v107
    %v110 = vmul.f32 %v108, %v108
    %v111 = vsel %vm91, %v109, 0.0
    %112 = vadd.xlane.f32.xlu0 %v111
    %v113 = vpop.xlane.xlu0 %112
    %v114 = vsel %vm91, %v110, 0.0
    %115 = vadd.xlane.f32.xlu0 %v114
    %v116 = vpop.xlane.xlu0 %115
    %v117 = vmul.f32 %v113, %v104
    %v118 = vmul.f32 %v116, %v104
    %v119 = vadd.f32 %v117, 1e-05
    %v120 = vadd.f32 %v118, 1e-05
    %v121 = vrsqrt.pop %v119
    %v122 = vmul.f32 %v121, %v119
    %v123 = vmul.f32 %v122, %v121
    %v124 = vmul.f32 0.5, %v123
    %v125 = vsub.f32 1.5, %v124
    %v126 = vmul.f32 %v121, %v125
    %vm127 = vweird.f32 %v119
    %vm128 = vweird.f32 %v121
    %vm129 = vmor %vm127, %vm128
    %v130 = vsel %vm129, %v121, %v126
    %v131 = vrsqrt.pop %v120
    %v132 = vmul.f32 %v131, %v120
    %v133 = vmul.f32 %v132, %v131
    %v134 = vmul.f32 0.5, %v133
    %v135 = vsub.f32 1.5, %v134
    %v136 = vmul.f32 %v131, %v135
    %vm137 = vweird.f32 %v120
    %vm138 = vweird.f32 %v131
    %vm139 = vmor %vm137, %vm138
    %v140 = vsel %vm139, %v131, %v136
    %v141 = vmul.f32 %v107, %v130
    %v142 = vmul.f32 %v108, %v140
    %v144 = vperm.slane %v51, 0
    %v146 = vmul.f32 %v141, %v144
    %v147 = vmul.f32 %v142, %v144
    %v149 = vperm.slane %v52, 0
    %v151 = vadd.f32 %v146, %v149
    %v152 = vadd.f32 %v147, %v149
    %v153 = vld [vmem:[%s2] sm:$0xff]
    %v154 = vld [vmem:[%s2 + $0x8] sm:$0xff]
    %v156 = vperm.slane %v67, 0
    %v159 = vsel %vm91, %v151, 0
    %v162 = vsel %vm91, %v152, 0
    %164 = vmatpush.msra.mxu0 0.0
    %165 = vmatpush.msra.mxu0 0.0
    %166 = vmatpush.msra.mxu0 0.0
    %167 = vmatpush.msra.mxu0 0.0
    %168 = vmatpush.msra.mxu0 0.0
    %169 = vmatpush.msra.mxu0 0.0
    %170 = vmatpush.msra.mxu0 0.0
    %171 = vmatpush.msra.mxu0 0.0
    %172 = vmatpush.msra.mxu0 0.0
    %173 = vmatpush.msra.mxu0 0.0
    %174 = vmatpush.msra.mxu0 0.0
    %175 = vmatpush.msra.mxu0 0.0
    %176 = vmatpush.msra.mxu0 %v62
    %177 = vmatpush.msra.mxu0 %v61
    %178 = vmatpush.msra.mxu0 %v60
    %179 = vmatpush.msra.mxu0 %v59
    %180 = vmatmul.f32.gmra.mxu0 %v159
    %v181 = vpop.f32.mrf.mxu0
    %v182 = vadd.f32 %v156, %v181
    %183 = vmatmul.f32.gmra.mxu0 %v162
    %v184 = vpop.f32.mrf.mxu0
    %v185 = vadd.f32 %v156, %v184
    %186 = vdwg.mxu0
    %v188 = vperm.slane %v77, 0
    %190 = vmatpush.msra.mxu0 0.0
    %191 = vmatpush.msra.mxu0 0.0
    %192 = vmatpush.msra.mxu0 0.0
    %193 = vmatpush.msra.mxu0 0.0
    %194 = vmatpush.msra.mxu0 0.0
    %195 = vmatpush.msra.mxu0 0.0
    %196 = vmatpush.msra.mxu0 0.0
    %197 = vmatpush.msra.mxu0 0.0
    %198 = vmatpush.msra.mxu0 0.0
    %199 = vmatpush.msra.mxu0 0.0
    %200 = vmatpush.msra.mxu0 0.0
    %201 = vmatpush.msra.mxu0 0.0
    %202 = vmatpush.msra.mxu0 %v72
    %203 = vmatpush.msra.mxu0 %v71
    %204 = vmatpush.msra.mxu0 %v70
    %205 = vmatpush.msra.mxu0 %v69
    %206 = vmatmul.f32.gmra.mxu0 %v159
    %v207 = vpop.f32.mrf.mxu0
    %v208 = vadd.f32 %v188, %v207
    %209 = vmatmul.f32.gmra.mxu0 %v162
    %v210 = vpop.f32.mrf.mxu0
    %v211 = vadd.f32 %v188, %v210
    %212 = vdwg.mxu0
    %vm213 = vcmask 64512
    %v215 = vsel %vm213, %v182, 0
    %v218 = vsel %vm213, %v185, 0
    %v221 = vsel %vm213, %v208, 0
    %v224 = vsel %vm213, %v211, 0
    %226 = vmatpush.xpose.msra.mxu0 0.0
    %227 = vmatpush.xpose.msra.mxu0 0.0
    %228 = vmatpush.xpose.msra.mxu0 0.0
    %229 = vmatpush.xpose.msra.mxu0 0.0
    %230 = vmatpush.xpose.msra.mxu0 0.0
    %231 = vmatpush.xpose.msra.mxu0 0.0
    %232 = vmatpush.xpose.msra.mxu0 0.0
    %233 = vmatpush.xpose.msra.mxu0 0.0
    %234 = vmatpush.xpose.msra.mxu0 0.0
    %235 = vmatpush.xpose.msra.mxu0 0.0
    %236 = vmatpush.xpose.msra.mxu0 0.0
    %237 = vmatpush.xpose.msra.mxu0 0.0
    %238 = vmatpush.xpose.msra.mxu0 0.0
    %239 = vmatpush.xpose.msra.mxu0 0.0
    %240 = vmatpush.xpose.msra.mxu0 %v224
    %241 = vmatpush.xpose.msra.mxu0 %v221
    %242 = vmatmul.f32.gmra.mxu0 %v215
    %v243 = vpop.f32.mrf.mxu0
    %v244 = vadd.f32 %v153, %v243
    %245 = vmatmul.f32.gmra.mxu0 %v218
    %v246 = vpop.f32.mrf.mxu0
    %v247 = vadd.f32 %v154, %v246
    %248 = vdwg.mxu0
    %vm249 = vcmask 130048
    %v250 = vsel %vm249, %v244, -inf
    %251 = vmax.xlane.f32.xlu0 %v250
    %v252 = vpop.xlane.xlu0 %251
    %v253 = vsel %vm249, %v247, -inf
    %254 = vmax.xlane.f32.xlu0 %v253
    %v255 = vpop.xlane.xlu0 %254
    %v256 = vsub.f32 %v244, %v252
    %v257 = vsub.f32 %v247, %v255
    %v258 = vmul.f32 %v256, 1.442695
    %v259 = vpow.pop %v258
    %v260 = vmul.f32 %v257, 1.442695
    %v261 = vpow.pop %v260
    %v262 = vsel %vm249, %v259, 0.0
    %263 = vadd.xlane.f32.xlu0 %v262
    %v264 = vpop.xlane.xlu0 %263
    %v265 = vsel %vm249, %v261, 0.0
    %266 = vadd.xlane.f32.xlu0 %v265
    %v267 = vpop.xlane.xlu0 %266
    %v268 = vrcp.pop %v264
    %v269 = vrcp.pop %v267
    %v270 = vmul.f32 %v259, %v268
    %v271 = vmul.f32 %v261, %v269
    %272 = vrot.lane.b32.xlu0 %v208, 96
    %v273 = vpop.permute.xlu0 %272
    %274 = vrot.lane.b32.xlu0 %v211, 96
    %v275 = vpop.permute.xlu0 %274
    %v279 = vsel %vm249, %v270, 0
    %v282 = vsel %vm249, %v271, 0
    %284 = vmatpush.msra.mxu0 0.0
    %285 = vmatpush.msra.mxu0 0.0
    %286 = vmatpush.msra.mxu0 0.0
    %287 = vmatpush.msra.mxu0 0.0
    %288 = vmatpush.msra.mxu0 0.0
    %289 = vmatpush.msra.mxu0 0.0
    %290 = vmatpush.msra.mxu0 0.0
    %291 = vmatpush.msra.mxu0 0.0
    %292 = vmatpush.msra.mxu0 0.0
    %293 = vmatpush.msra.mxu0 0.0
    %294 = vmatpush.msra.mxu0 0.0
    %295 = vmatpush.msra.mxu0 0.0
    %296 = vmatpush.msra.mxu0 0.0
    %297 = vmatpush.msra.mxu0 0.0
    %298 = vmatpush.msra.mxu0 %v275
    %299 = vmatpush.msra.mxu0 %v273
    %300 = vmatmul.f32.gmra.mxu0 %v279
    %v301 = vpop.f32.mrf.mxu0
    %v302 = vadd.f32 0.0, %v301
    %303 = vmatmul.f32.gmra.mxu0 %v282
    %v304 = vpop.f32.mrf.mxu0
    %v305 = vadd.f32 0.0, %v304
    %306 = vdwg.mxu0
    %307 = vrot.lane.b32.xlu0 %v182, 120
    %v308 = vpop.permute.xlu0 %307
    %309 = vrot.lane.b32.xlu0 %v185, 120
    %v310 = vpop.permute.xlu0 %309
    %311 = vrot.lane.b32.xlu0 %v208, 120
    %v312 = vpop.permute.xlu0 %311
    %313 = vrot.lane.b32.xlu0 %v211, 120
    %v314 = vpop.permute.xlu0 %313
    %v315 = vsel %vm213, %v308, 0
    %v317 = vsel %vm213, %v310, 0
    %v319 = vsel %vm213, %v312, 0
    %v321 = vsel %vm213, %v314, 0
    %323 = vmatpush.xpose.msra.mxu0 0.0
    %324 = vmatpush.xpose.msra.mxu0 0.0
    %325 = vmatpush.xpose.msra.mxu0 0.0
    %326 = vmatpush.xpose.msra.mxu0 0.0
    %327 = vmatpush.xpose.msra.mxu0 0.0
    %328 = vmatpush.xpose.msra.mxu0 0.0
    %329 = vmatpush.xpose.msra.mxu0 0.0
    %330 = vmatpush.xpose.msra.mxu0 0.0
    %331 = vmatpush.xpose.msra.mxu0 0.0
    %332 = vmatpush.xpose.msra.mxu0 0.0
    %333 = vmatpush.xpose.msra.mxu0 0.0
    %334 = vmatpush.xpose.msra.mxu0 0.0
    %335 = vmatpush.xpose.msra.mxu0 0.0
    %336 = vmatpush.xpose.msra.mxu0 0.0
    %337 = vmatpush.xpose.msra.mxu0 %v321
    %338 = vmatpush.xpose.msra.mxu0 %v319
    %339 = vmatmul.f32.gmra.mxu0 %v315
    %v340 = vpop.f32.mrf.mxu0
    %v341 = vadd.f32 %v153, %v340
    %342 = vmatmul.f32.gmra.mxu0 %v317
    %v343 = vpop.f32.mrf.mxu0
    %v344 = vadd.f32 %v154, %v343
    %345 = vdwg.mxu0
    %v346 = vsel %vm249, %v341, -inf
    %347 = vmax.xlane.f32.xlu0 %v346
    %v348 = vpop.xlane.xlu0 %347
    %v349 = vsel %vm249, %v344, -inf
    %350 = vmax.xlane.f32.xlu0 %v349
    %v351 = vpop.xlane.xlu0 %350
    %v352 = vsub.f32 %v341, %v348
    %v353 = vsub.f32 %v344, %v351
    %v354 = vmul.f32 %v352, 1.442695
    %v355 = vpow.pop %v354
    %v356 = vmul.f32 %v353, 1.442695
    %v357 = vpow.pop %v356
    %v358 = vsel %vm249, %v355, 0.0
    %359 = vadd.xlane.f32.xlu0 %v358
    %v360 = vpop.xlane.xlu0 %359
    %v361 = vsel %vm249, %v357, 0.0
    %362 = vadd.xlane.f32.xlu0 %v361
    %v363 = vpop.xlane.xlu0 %362
    %v364 = vrcp.pop %v360
    %v365 = vrcp.pop %v363
    %v366 = vmul.f32 %v355, %v364
    %v367 = vmul.f32 %v357, %v365
    %368 = vrot.lane.b32.xlu0 %v208, 88
    %v369 = vpop.permute.xlu0 %368
    %370 = vrot.lane.b32.xlu0 %v211, 88
    %v371 = vpop.permute.xlu0 %370
    %v375 = vsel %vm249, %v366, 0
    %v378 = vsel %vm249, %v367, 0
    %380 = vmatpush.msra.mxu0 0.0
    %381 = vmatpush.msra.mxu0 0.0
    %382 = vmatpush.msra.mxu0 0.0
    %383 = vmatpush.msra.mxu0 0.0
    %384 = vmatpush.msra.mxu0 0.0
    %385 = vmatpush.msra.mxu0 0.0
    %386 = vmatpush.msra.mxu0 0.0
    %387 = vmatpush.msra.mxu0 0.0
    %388 = vmatpush.msra.mxu0 0.0
    %389 = vmatpush.msra.mxu0 0.0
    %390 = vmatpush.msra.mxu0 0.0
    %391 = vmatpush.msra.mxu0 0.0
    %392 = vmatpush.msra.mxu0 0.0
    %393 = vmatpush.msra.mxu0 0.0
    %394 = vmatpush.msra.mxu0 %v371
    %395 = vmatpush.msra.mxu0 %v369
    %396 = vmatmul.f32.gmra.mxu0 %v375
    %v397 = vpop.f32.mrf.mxu0
    %v398 = vadd.f32 0.0, %v397
    %399 = vmatmul.f32.gmra.mxu0 %v378
    %v400 = vpop.f32.mrf.mxu0
    %v401 = vadd.f32 0.0, %v400
    %402 = vdwg.mxu0
    %403 = vrot.lane.b32.xlu0 %v182, 112
    %v404 = vpop.permute.xlu0 %403
    %405 = vrot.lane.b32.xlu0 %v185, 112
    %v406 = vpop.permute.xlu0 %405
    %407 = vrot.lane.b32.xlu0 %v208, 112
    %v408 = vpop.permute.xlu0 %407
    %409 = vrot.lane.b32.xlu0 %v211, 112
    %v410 = vpop.permute.xlu0 %409
    %v411 = vsel %vm213, %v404, 0
    %v413 = vsel %vm213, %v406, 0
    %v415 = vsel %vm213, %v408, 0
    %v417 = vsel %vm213, %v410, 0
    %419 = vmatpush.xpose.msra.mxu0 0.0
    %420 = vmatpush.xpose.msra.mxu0 0.0
    %421 = vmatpush.xpose.msra.mxu0 0.0
    %422 = vmatpush.xpose.msra.mxu0 0.0
    %423 = vmatpush.xpose.msra.mxu0 0.0
    %424 = vmatpush.xpose.msra.mxu0 0.0
    %425 = vmatpush.xpose.msra.mxu0 0.0
    %426 = vmatpush.xpose.msra.mxu0 0.0
    %427 = vmatpush.xpose.msra.mxu0 0.0
    %428 = vmatpush.xpose.msra.mxu0 0.0
    %429 = vmatpush.xpose.msra.mxu0 0.0
    %430 = vmatpush.xpose.msra.mxu0 0.0
    %431 = vmatpush.xpose.msra.mxu0 0.0
    %432 = vmatpush.xpose.msra.mxu0 0.0
    %433 = vmatpush.xpose.msra.mxu0 %v417
    %434 = vmatpush.xpose.msra.mxu0 %v415
    %435 = vmatmul.f32.gmra.mxu0 %v411
    %v436 = vpop.f32.mrf.mxu0
    %v437 = vadd.f32 %v153, %v436
    %438 = vmatmul.f32.gmra.mxu0 %v413
    %v439 = vpop.f32.mrf.mxu0
    %v440 = vadd.f32 %v154, %v439
    %441 = vdwg.mxu0
    %v442 = vsel %vm249, %v437, -inf
    %443 = vmax.xlane.f32.xlu0 %v442
    %v444 = vpop.xlane.xlu0 %443
    %v445 = vsel %vm249, %v440, -inf
    %446 = vmax.xlane.f32.xlu0 %v445
    %v447 = vpop.xlane.xlu0 %446
    %v448 = vsub.f32 %v437, %v444
    %v449 = vsub.f32 %v440, %v447
    %v450 = vmul.f32 %v448, 1.442695
    %v451 = vpow.pop %v450
    %v452 = vmul.f32 %v449, 1.442695
    %v453 = vpow.pop %v452
    %v454 = vsel %vm249, %v451, 0.0
    %455 = vadd.xlane.f32.xlu0 %v454
    %v456 = vpop.xlane.xlu0 %455
    %v457 = vsel %vm249, %v453, 0.0
    %458 = vadd.xlane.f32.xlu0 %v457
    %v459 = vpop.xlane.xlu0 %458
    %v460 = vrcp.pop %v456
    %v461 = vrcp.pop %v459
    %v462 = vmul.f32 %v451, %v460
    %v463 = vmul.f32 %v453, %v461
    %464 = vrot.lane.b32.xlu0 %v208, 80
    %v465 = vpop.permute.xlu0 %464
    %466 = vrot.lane.b32.xlu0 %v211, 80
    %v467 = vpop.permute.xlu0 %466
    %v471 = vsel %vm249, %v462, 0
    %v474 = vsel %vm249, %v463, 0
    %476 = vmatpush.msra.mxu0 0.0
    %477 = vmatpush.msra.mxu0 0.0
    %478 = vmatpush.msra.mxu0 0.0
    %479 = vmatpush.msra.mxu0 0.0
    %480 = vmatpush.msra.mxu0 0.0
    %481 = vmatpush.msra.mxu0 0.0
    %482 = vmatpush.msra.mxu0 0.0
    %483 = vmatpush.msra.mxu0 0.0
    %484 = vmatpush.msra.mxu0 0.0
    %485 = vmatpush.msra.mxu0 0.0
    %486 = vmatpush.msra.mxu0 0.0
    %487 = vmatpush.msra.mxu0 0.0
    %488 = vmatpush.msra.mxu0 0.0
    %489 = vmatpush.msra.mxu0 0.0
    %490 = vmatpush.msra.mxu0 %v467
    %491 = vmatpush.msra.mxu0 %v465
    %492 = vmatmul.f32.gmra.mxu0 %v471
    %v493 = vpop.f32.mrf.mxu0
    %v494 = vadd.f32 0.0, %v493
    %495 = vmatmul.f32.gmra.mxu0 %v474
    %v496 = vpop.f32.mrf.mxu0
    %v497 = vadd.f32 0.0, %v496
    %498 = vdwg.mxu0
    %499 = vrot.lane.b32.xlu0 %v182, 104
    %v500 = vpop.permute.xlu0 %499
    %501 = vrot.lane.b32.xlu0 %v185, 104
    %v502 = vpop.permute.xlu0 %501
    %503 = vrot.lane.b32.xlu0 %v208, 104
    %v504 = vpop.permute.xlu0 %503
    %505 = vrot.lane.b32.xlu0 %v211, 104
    %v506 = vpop.permute.xlu0 %505
    %v507 = vsel %vm213, %v500, 0
    %v509 = vsel %vm213, %v502, 0
    %v511 = vsel %vm213, %v504, 0
    %v513 = vsel %vm213, %v506, 0
    %515 = vmatpush.xpose.msra.mxu0 0.0
    %516 = vmatpush.xpose.msra.mxu0 0.0
    %517 = vmatpush.xpose.msra.mxu0 0.0
    %518 = vmatpush.xpose.msra.mxu0 0.0
    %519 = vmatpush.xpose.msra.mxu0 0.0
    %520 = vmatpush.xpose.msra.mxu0 0.0
    %521 = vmatpush.xpose.msra.mxu0 0.0
    %522 = vmatpush.xpose.msra.mxu0 0.0
    %523 = vmatpush.xpose.msra.mxu0 0.0
    %524 = vmatpush.xpose.msra.mxu0 0.0
    %525 = vmatpush.xpose.msra.mxu0 0.0
    %526 = vmatpush.xpose.msra.mxu0 0.0
    %527 = vmatpush.xpose.msra.mxu0 0.0
    %528 = vmatpush.xpose.msra.mxu0 0.0
    %529 = vmatpush.xpose.msra.mxu0 %v513
    %530 = vmatpush.xpose.msra.mxu0 %v511
    %531 = vmatmul.f32.gmra.mxu0 %v507
    %v532 = vpop.f32.mrf.mxu0
    %v533 = vadd.f32 %v153, %v532
    %534 = vmatmul.f32.gmra.mxu0 %v509
    %v535 = vpop.f32.mrf.mxu0
    %v536 = vadd.f32 %v154, %v535
    %537 = vdwg.mxu0
    %v538 = vsel %vm249, %v533, -inf
    %539 = vmax.xlane.f32.xlu0 %v538
    %v540 = vpop.xlane.xlu0 %539
    %v541 = vsel %vm249, %v536, -inf
    %542 = vmax.xlane.f32.xlu0 %v541
    %v543 = vpop.xlane.xlu0 %542
    %v544 = vsub.f32 %v533, %v540
    %v545 = vsub.f32 %v536, %v543
    %v546 = vmul.f32 %v544, 1.442695
    %v547 = vpow.pop %v546
    %v548 = vmul.f32 %v545, 1.442695
    %v549 = vpow.pop %v548
    %v550 = vsel %vm249, %v547, 0.0
    %551 = vadd.xlane.f32.xlu0 %v550
    %v552 = vpop.xlane.xlu0 %551
    %v553 = vsel %vm249, %v549, 0.0
    %554 = vadd.xlane.f32.xlu0 %v553
    %v555 = vpop.xlane.xlu0 %554
    %v556 = vrcp.pop %v552
    %v557 = vrcp.pop %v555
    %v558 = vmul.f32 %v547, %v556
    %v559 = vmul.f32 %v549, %v557
    %560 = vrot.lane.b32.xlu0 %v208, 72
    %v561 = vpop.permute.xlu0 %560
    %562 = vrot.lane.b32.xlu0 %v211, 72
    %v563 = vpop.permute.xlu0 %562
    %v567 = vsel %vm249, %v558, 0
    %v570 = vsel %vm249, %v559, 0
    %572 = vmatpush.msra.mxu0 0.0
    %573 = vmatpush.msra.mxu0 0.0
    %574 = vmatpush.msra.mxu0 0.0
    %575 = vmatpush.msra.mxu0 0.0
    %576 = vmatpush.msra.mxu0 0.0
    %577 = vmatpush.msra.mxu0 0.0
    %578 = vmatpush.msra.mxu0 0.0
    %579 = vmatpush.msra.mxu0 0.0
    %580 = vmatpush.msra.mxu0 0.0
    %581 = vmatpush.msra.mxu0 0.0
    %582 = vmatpush.msra.mxu0 0.0
    %583 = vmatpush.msra.mxu0 0.0
    %584 = vmatpush.msra.mxu0 0.0
    %585 = vmatpush.msra.mxu0 0.0
    %586 = vmatpush.msra.mxu0 %v563
    %587 = vmatpush.msra.mxu0 %v561
    %588 = vmatmul.f32.gmra.mxu0 %v567
    %v589 = vpop.f32.mrf.mxu0
    %v590 = vadd.f32 0.0, %v589
    %591 = vmatmul.f32.gmra.mxu0 %v570
    %v592 = vpop.f32.mrf.mxu0
    %v593 = vadd.f32 0.0, %v592
    %594 = vdwg.mxu0
    %597 = vrot.lane.b32.xlu0 %v398, 8
    %v598 = vpop.permute.xlu0 %597
    %599 = vrot.lane.b32.xlu0 %v401, 8
    %v600 = vpop.permute.xlu0 %599
    %605 = vrot.lane.b32.xlu0 %v494, 16
    %v606 = vpop.permute.xlu0 %605
    %607 = vrot.lane.b32.xlu0 %v497, 16
    %v608 = vpop.permute.xlu0 %607
    %613 = vrot.lane.b32.xlu0 %v590, 24
    %v614 = vpop.permute.xlu0 %613
    %615 = vrot.lane.b32.xlu0 %v593, 24
    %v616 = vpop.permute.xlu0 %615
    %v619 = vsel %vm213, %v302, %v598
    %v620 = vsel %vm213, %v305, %v600
    %v621 = vsel %vm249, %v619, %v606
    %v622 = vsel %vm249, %v620, %v608
    %vm623 = vcmask 195584
    %v624 = vsel %vm623, %v621, %v614
    %v625 = vsel %vm623, %v622, %v616
    %v627 = vperm.slane %v87, 0
    %v630 = vsel %vm91, %v624, 0
    %v633 = vsel %vm91, %v625, 0
    %635 = vmatpush.msra.mxu0 0.0
    %636 = vmatpush.msra.mxu0 0.0
    %637 = vmatpush.msra.mxu0 0.0
    %638 = vmatpush.msra.mxu0 0.0
    %639 = vmatpush.msra.mxu0 0.0
    %640 = vmatpush.msra.mxu0 0.0
    %641 = vmatpush.msra.mxu0 0.0
    %642 = vmatpush.msra.mxu0 0.0
    %643 = vmatpush.msra.mxu0 0.0
    %644 = vmatpush.msra.mxu0 0.0
    %645 = vmatpush.msra.mxu0 0.0
    %646 = vmatpush.msra.mxu0 0.0
    %647 = vmatpush.msra.mxu0 %v82
    %648 = vmatpush.msra.mxu0 %v81
    %649 = vmatpush.msra.mxu0 %v80
    %650 = vmatpush.msra.mxu0 %v79
    %651 = vmatmul.f32.gmra.mxu0 %v630
    %v652 = vpop.f32.mrf.mxu0
    %v653 = vadd.f32 %v627, %v652
    %654 = vmatmul.f32.gmra.mxu0 %v633
    %v655 = vpop.f32.mrf.mxu0
    %v656 = vadd.f32 %v627, %v655
    %657 = vdwg.mxu0
    %v658 = vadd.f32 %v151, %v653
    %v659 = vadd.f32 %v152, %v656
    %v660 = vsel %vm91, %v658, 0.0
    %661 = vadd.xlane.f32.xlu0 %v660
    %v662 = vpop.xlane.xlu0 %661
    %v663 = vsel %vm91, %v659, 0.0
    %664 = vadd.xlane.f32.xlu0 %v663
    %v665 = vpop.xlane.xlu0 %664
    %v666 = vmul.f32 %v662, %v104
    %v667 = vmul.f32 %v665, %v104
    %v668 = vsub.f32 %v658, %v666
    %v669 = vsub.f32 %v659, %v667
    %v670 = vmul.f32 %v668, %v668
    %v671 = vmul.f32 %v669, %v669
    %v672 = vsel %vm91, %v670, 0.0
    %673 = vadd.xlane.f32.xlu0 %v672
    %v674 = vpop.xlane.xlu0 %673
    %v675 = vsel %vm91, %v671, 0.0
    %676 = vadd.xlane.f32.xlu0 %v675
    %v677 = vpop.xlane.xlu0 %676
    %v678 = vmul.f32 %v674, %v104
    %v679 = vmul.f32 %v677, %v104
    %v680 = vadd.f32 %v678, 1e-05
    %v681 = vadd.f32 %v679, 1e-05
    %v682 = vrsqrt.pop %v680
    %v683 = vmul.f32 %v682, %v680
    %v684 = vmul.f32 %v683, %v682
    %v685 = vmul.f32 0.5, %v684
    %v686 = vsub.f32 1.5, %v685
    %v687 = vmul.f32 %v682, %v686
    %vm688 = vweird.f32 %v680
    %vm689 = vweird.f32 %v682
    %vm690 = vmor %vm688, %vm689
    %v691 = vsel %vm690, %v682, %v687
    %v692 = vrsqrt.pop %v681
    %v693 = vmul.f32 %v692, %v681
    %v694 = vmul.f32 %v693, %v692
    %v695 = vmul.f32 0.5, %v694
    %v696 = vsub.f32 1.5, %v695
    %v697 = vmul.f32 %v692, %v696
    %vm698 = vweird.f32 %v681
    %vm699 = vweird.f32 %v692
    %vm700 = vmor %vm698, %vm699
    %v701 = vsel %vm700, %v692, %v697
    %v702 = vmul.f32 %v668, %v691
    %v703 = vmul.f32 %v669, %v701
    %v705 = vperm.slane %v53, 0
    %v707 = vmul.f32 %v702, %v705
    %v708 = vmul.f32 %v703, %v705
    %v710 = vperm.slane %v54, 0
    %v712 = vadd.f32 %v707, %v710
    %v713 = vadd.f32 %v708, %v710
    %v714 = vld [vmem:[%s1] sm:$0xff]
    %v715 = vld [vmem:[%s1 + $0x8] sm:$0xff]
    %v716 = vld [vmem:[%s3] sm:$0xff]
    %v717 = vld [vmem:[%s3 + $0x8] sm:$0xff]
    %v719 = vperm.slane %v68, 0
    %v722 = vsel %vm91, %v712, 0
    %v725 = vsel %vm91, %v713, 0
    %727 = vmatpush.msra.mxu0 0.0
    %728 = vmatpush.msra.mxu0 0.0
    %729 = vmatpush.msra.mxu0 0.0
    %730 = vmatpush.msra.mxu0 0.0
    %731 = vmatpush.msra.mxu0 0.0
    %732 = vmatpush.msra.mxu0 0.0
    %733 = vmatpush.msra.mxu0 0.0
    %734 = vmatpush.msra.mxu0 0.0
    %735 = vmatpush.msra.mxu0 0.0
    %736 = vmatpush.msra.mxu0 0.0
    %737 = vmatpush.msra.mxu0 0.0
    %738 = vmatpush.msra.mxu0 0.0
    %739 = vmatpush.msra.mxu0 %v66
    %740 = vmatpush.msra.mxu0 %v65
    %741 = vmatpush.msra.mxu0 %v64
    %742 = vmatpush.msra.mxu0 %v63
    %743 = vmatmul.f32.gmra.mxu0 %v722
    %v744 = vpop.f32.mrf.mxu0
    %v745 = vadd.f32 %v719, %v744
    %746 = vmatmul.f32.gmra.mxu0 %v725
    %v747 = vpop.f32.mrf.mxu0
    %v748 = vadd.f32 %v719, %v747
    %749 = vdwg.mxu0
    %v751 = vperm.slane %v78, 0
    %v754 = vsel %vm91, %v714, 0
    %v757 = vsel %vm91, %v715, 0
    %759 = vmatpush.msra.mxu0 0.0
    %760 = vmatpush.msra.mxu0 0.0
    %761 = vmatpush.msra.mxu0 0.0
    %762 = vmatpush.msra.mxu0 0.0
    %763 = vmatpush.msra.mxu0 0.0
    %764 = vmatpush.msra.mxu0 0.0
    %765 = vmatpush.msra.mxu0 0.0
    %766 = vmatpush.msra.mxu0 0.0
    %767 = vmatpush.msra.mxu0 0.0
    %768 = vmatpush.msra.mxu0 0.0
    %769 = vmatpush.msra.mxu0 0.0
    %770 = vmatpush.msra.mxu0 0.0
    %771 = vmatpush.msra.mxu0 %v76
    %772 = vmatpush.msra.mxu0 %v75
    %773 = vmatpush.msra.mxu0 %v74
    %774 = vmatpush.msra.mxu0 %v73
    %775 = vmatmul.f32.gmra.mxu0 %v754
    %v776 = vpop.f32.mrf.mxu0
    %v777 = vadd.f32 %v751, %v776
    %778 = vmatmul.f32.gmra.mxu0 %v757
    %v779 = vpop.f32.mrf.mxu0
    %v780 = vadd.f32 %v751, %v779
    %781 = vdwg.mxu0
    %v783 = vsel %vm213, %v745, 0
    %v786 = vsel %vm213, %v748, 0
    %v789 = vsel %vm213, %v777, 0
    %v792 = vsel %vm213, %v780, 0
    %794 = vmatpush.xpose.msra.mxu0 0.0
    %795 = vmatpush.xpose.msra.mxu0 0.0
    %796 = vmatpush.xpose.msra.mxu0 0.0
    %797 = vmatpush.xpose.msra.mxu0 0.0
    %798 = vmatpush.xpose.msra.mxu0 0.0
    %799 = vmatpush.xpose.msra.mxu0 0.0
    %800 = vmatpush.xpose.msra.mxu0 0.0
    %801 = vmatpush.xpose.msra.mxu0 0.0
    %802 = vmatpush.xpose.msra.mxu0 0.0
    %803 = vmatpush.xpose.msra.mxu0 0.0
    %804 = vmatpush.xpose.msra.mxu0 0.0
    %805 = vmatpush.xpose.msra.mxu0 0.0
    %806 = vmatpush.xpose.msra.mxu0 0.0
    %807 = vmatpush.xpose.msra.mxu0 0.0
    %808 = vmatpush.xpose.msra.mxu0 %v792
    %809 = vmatpush.xpose.msra.mxu0 %v789
    %810 = vmatmul.f32.gmra.mxu0 %v783
    %v811 = vpop.f32.mrf.mxu0
    %v812 = vadd.f32 %v716, %v811
    %813 = vmatmul.f32.gmra.mxu0 %v786
    %v814 = vpop.f32.mrf.mxu0
    %v815 = vadd.f32 %v717, %v814
    %816 = vdwg.mxu0
    %v817 = vsel %vm249, %v812, -inf
    %818 = vmax.xlane.f32.xlu0 %v817
    %v819 = vpop.xlane.xlu0 %818
    %v820 = vsel %vm249, %v815, -inf
    %821 = vmax.xlane.f32.xlu0 %v820
    %v822 = vpop.xlane.xlu0 %821
    %v823 = vsub.f32 %v812, %v819
    %v824 = vsub.f32 %v815, %v822
    %v825 = vmul.f32 %v823, 1.442695
    %v826 = vpow.pop %v825
    %v827 = vmul.f32 %v824, 1.442695
    %v828 = vpow.pop %v827
    %v829 = vsel %vm249, %v826, 0.0
    %830 = vadd.xlane.f32.xlu0 %v829
    %v831 = vpop.xlane.xlu0 %830
    %v832 = vsel %vm249, %v828, 0.0
    %833 = vadd.xlane.f32.xlu0 %v832
    %v834 = vpop.xlane.xlu0 %833
    %v835 = vrcp.pop %v831
    %v836 = vrcp.pop %v834
    %v837 = vmul.f32 %v826, %v835
    %v838 = vmul.f32 %v828, %v836
    %839 = vrot.lane.b32.xlu0 %v777, 96
    %v840 = vpop.permute.xlu0 %839
    %841 = vrot.lane.b32.xlu0 %v780, 96
    %v842 = vpop.permute.xlu0 %841
    %v846 = vsel %vm249, %v837, 0
    %v849 = vsel %vm249, %v838, 0
    %851 = vmatpush.msra.mxu0 0.0
    %852 = vmatpush.msra.mxu0 0.0
    %853 = vmatpush.msra.mxu0 0.0
    %854 = vmatpush.msra.mxu0 0.0
    %855 = vmatpush.msra.mxu0 0.0
    %856 = vmatpush.msra.mxu0 0.0
    %857 = vmatpush.msra.mxu0 0.0
    %858 = vmatpush.msra.mxu0 0.0
    %859 = vmatpush.msra.mxu0 0.0
    %860 = vmatpush.msra.mxu0 0.0
    %861 = vmatpush.msra.mxu0 0.0
    %862 = vmatpush.msra.mxu0 0.0
    %863 = vmatpush.msra.mxu0 0.0
    %864 = vmatpush.msra.mxu0 0.0
    %865 = vmatpush.msra.mxu0 %v842
    %866 = vmatpush.msra.mxu0 %v840
    %867 = vmatmul.f32.gmra.mxu0 %v846
    %v868 = vpop.f32.mrf.mxu0
    %v869 = vadd.f32 0.0, %v868
    %870 = vmatmul.f32.gmra.mxu0 %v849
    %v871 = vpop.f32.mrf.mxu0
    %v872 = vadd.f32 0.0, %v871
    %873 = vdwg.mxu0
    %874 = vrot.lane.b32.xlu0 %v745, 120
    %v875 = vpop.permute.xlu0 %874
    %876 = vrot.lane.b32.xlu0 %v748, 120
    %v877 = vpop.permute.xlu0 %876
    %878 = vrot.lane.b32.xlu0 %v777, 120
    %v879 = vpop.permute.xlu0 %878
    %880 = vrot.lane.b32.xlu0 %v780, 120
    %v881 = vpop.permute.xlu0 %880
    %v882 = vsel %vm213, %v875, 0
    %v884 = vsel %vm213, %v877, 0
    %v886 = vsel %vm213, %v879, 0
    %v888 = vsel %vm213, %v881, 0
    %890 = vmatpush.xpose.msra.mxu0 0.0
    %891 = vmatpush.xpose.msra.mxu0 0.0
    %892 = vmatpush.xpose.msra.mxu0 0.0
    %893 = vmatpush.xpose.msra.mxu0 0.0
    %894 = vmatpush.xpose.msra.mxu0 0.0
    %895 = vmatpush.xpose.msra.mxu0 0.0
    %896 = vmatpush.xpose.msra.mxu0 0.0
    %897 = vmatpush.xpose.msra.mxu0 0.0
    %898 = vmatpush.xpose.msra.mxu0 0.0
    %899 = vmatpush.xpose.msra.mxu0 0.0
    %900 = vmatpush.xpose.msra.mxu0 0.0
    %901 = vmatpush.xpose.msra.mxu0 0.0
    %902 = vmatpush.xpose.msra.mxu0 0.0
    %903 = vmatpush.xpose.msra.mxu0 0.0
    %904 = vmatpush.xpose.msra.mxu0 %v888
    %905 = vmatpush.xpose.msra.mxu0 %v886
    %906 = vmatmul.f32.gmra.mxu0 %v882
    %v907 = vpop.f32.mrf.mxu0
    %v908 = vadd.f32 %v716, %v907
    %909 = vmatmul.f32.gmra.mxu0 %v884
    %v910 = vpop.f32.mrf.mxu0
    %v911 = vadd.f32 %v717, %v910
    %912 = vdwg.mxu0
    %v913 = vsel %vm249, %v908, -inf
    %914 = vmax.xlane.f32.xlu0 %v913
    %v915 = vpop.xlane.xlu0 %914
    %v916 = vsel %vm249, %v911, -inf
    %917 = vmax.xlane.f32.xlu0 %v916
    %v918 = vpop.xlane.xlu0 %917
    %v919 = vsub.f32 %v908, %v915
    %v920 = vsub.f32 %v911, %v918
    %v921 = vmul.f32 %v919, 1.442695
    %v922 = vpow.pop %v921
    %v923 = vmul.f32 %v920, 1.442695
    %v924 = vpow.pop %v923
    %v925 = vsel %vm249, %v922, 0.0
    %926 = vadd.xlane.f32.xlu0 %v925
    %v927 = vpop.xlane.xlu0 %926
    %v928 = vsel %vm249, %v924, 0.0
    %929 = vadd.xlane.f32.xlu0 %v928
    %v930 = vpop.xlane.xlu0 %929
    %v931 = vrcp.pop %v927
    %v932 = vrcp.pop %v930
    %v933 = vmul.f32 %v922, %v931
    %v934 = vmul.f32 %v924, %v932
    %935 = vrot.lane.b32.xlu0 %v777, 88
    %v936 = vpop.permute.xlu0 %935
    %937 = vrot.lane.b32.xlu0 %v780, 88
    %v938 = vpop.permute.xlu0 %937
    %v942 = vsel %vm249, %v933, 0
    %v945 = vsel %vm249, %v934, 0
    %947 = vmatpush.msra.mxu0 0.0
    %948 = vmatpush.msra.mxu0 0.0
    %949 = vmatpush.msra.mxu0 0.0
    %950 = vmatpush.msra.mxu0 0.0
    %951 = vmatpush.msra.mxu0 0.0
    %952 = vmatpush.msra.mxu0 0.0
    %953 = vmatpush.msra.mxu0 0.0
    %954 = vmatpush.msra.mxu0 0.0
    %955 = vmatpush.msra.mxu0 0.0
    %956 = vmatpush.msra.mxu0 0.0
    %957 = vmatpush.msra.mxu0 0.0
    %958 = vmatpush.msra.mxu0 0.0
    %959 = vmatpush.msra.mxu0 0.0
    %960 = vmatpush.msra.mxu0 0.0
    %961 = vmatpush.msra.mxu0 %v938
    %962 = vmatpush.msra.mxu0 %v936
    %963 = vmatmul.f32.gmra.mxu0 %v942
    %v964 = vpop.f32.mrf.mxu0
    %v965 = vadd.f32 0.0, %v964
    %966 = vmatmul.f32.gmra.mxu0 %v945
    %v967 = vpop.f32.mrf.mxu0
    %v968 = vadd.f32 0.0, %v967
    %969 = vdwg.mxu0
    %970 = vrot.lane.b32.xlu0 %v745, 112
    %v971 = vpop.permute.xlu0 %970
    %972 = vrot.lane.b32.xlu0 %v748, 112
    %v973 = vpop.permute.xlu0 %972
    %974 = vrot.lane.b32.xlu0 %v777, 112
    %v975 = vpop.permute.xlu0 %974
    %976 = vrot.lane.b32.xlu0 %v780, 112
    %v977 = vpop.permute.xlu0 %976
    %v978 = vsel %vm213, %v971, 0
    %v980 = vsel %vm213, %v973, 0
    %v982 = vsel %vm213, %v975, 0
    %v984 = vsel %vm213, %v977, 0
    %986 = vmatpush.xpose.msra.mxu0 0.0
    %987 = vmatpush.xpose.msra.mxu0 0.0
    %988 = vmatpush.xpose.msra.mxu0 0.0
    %989 = vmatpush.xpose.msra.mxu0 0.0
    %990 = vmatpush.xpose.msra.mxu0 0.0
    %991 = vmatpush.xpose.msra.mxu0 0.0
    %992 = vmatpush.xpose.msra.mxu0 0.0
    %993 = vmatpush.xpose.msra.mxu0 0.0
    %994 = vmatpush.xpose.msra.mxu0 0.0
    %995 = vmatpush.xpose.msra.mxu0 0.0
    %996 = vmatpush.xpose.msra.mxu0 0.0
    %997 = vmatpush.xpose.msra.mxu0 0.0
    %998 = vmatpush.xpose.msra.mxu0 0.0
    %999 = vmatpush.xpose.msra.mxu0 0.0
    %1000 = vmatpush.xpose.msra.mxu0 %v984
    %1001 = vmatpush.xpose.msra.mxu0 %v982
    %1002 = vmatmul.f32.gmra.mxu0 %v978
    %v1003 = vpop.f32.mrf.mxu0
    %v1004 = vadd.f32 %v716, %v1003
    %1005 = vmatmul.f32.gmra.mxu0 %v980
    %v1006 = vpop.f32.mrf.mxu0
    %v1007 = vadd.f32 %v717, %v1006
    %1008 = vdwg.mxu0
    %v1009 = vsel %vm249, %v1004, -inf
    %1010 = vmax.xlane.f32.xlu0 %v1009
    %v1011 = vpop.xlane.xlu0 %1010
    %v1012 = vsel %vm249, %v1007, -inf
    %1013 = vmax.xlane.f32.xlu0 %v1012
    %v1014 = vpop.xlane.xlu0 %1013
    %v1015 = vsub.f32 %v1004, %v1011
    %v1016 = vsub.f32 %v1007, %v1014
    %v1017 = vmul.f32 %v1015, 1.442695
    %v1018 = vpow.pop %v1017
    %v1019 = vmul.f32 %v1016, 1.442695
    %v1020 = vpow.pop %v1019
    %v1021 = vsel %vm249, %v1018, 0.0
    %1022 = vadd.xlane.f32.xlu0 %v1021
    %v1023 = vpop.xlane.xlu0 %1022
    %v1024 = vsel %vm249, %v1020, 0.0
    %1025 = vadd.xlane.f32.xlu0 %v1024
    %v1026 = vpop.xlane.xlu0 %1025
    %v1027 = vrcp.pop %v1023
    %v1028 = vrcp.pop %v1026
    %v1029 = vmul.f32 %v1018, %v1027
    %v1030 = vmul.f32 %v1020, %v1028
    %1031 = vrot.lane.b32.xlu0 %v777, 80
    %v1032 = vpop.permute.xlu0 %1031
    %1033 = vrot.lane.b32.xlu0 %v780, 80
    %v1034 = vpop.permute.xlu0 %1033
    %v1038 = vsel %vm249, %v1029, 0
    %v1041 = vsel %vm249, %v1030, 0
    %1043 = vmatpush.msra.mxu0 0.0
    %1044 = vmatpush.msra.mxu0 0.0
    %1045 = vmatpush.msra.mxu0 0.0
    %1046 = vmatpush.msra.mxu0 0.0
    %1047 = vmatpush.msra.mxu0 0.0
    %1048 = vmatpush.msra.mxu0 0.0
    %1049 = vmatpush.msra.mxu0 0.0
    %1050 = vmatpush.msra.mxu0 0.0
    %1051 = vmatpush.msra.mxu0 0.0
    %1052 = vmatpush.msra.mxu0 0.0
    %1053 = vmatpush.msra.mxu0 0.0
    %1054 = vmatpush.msra.mxu0 0.0
    %1055 = vmatpush.msra.mxu0 0.0
    %1056 = vmatpush.msra.mxu0 0.0
    %1057 = vmatpush.msra.mxu0 %v1034
    %1058 = vmatpush.msra.mxu0 %v1032
    %1059 = vmatmul.f32.gmra.mxu0 %v1038
    %v1060 = vpop.f32.mrf.mxu0
    %v1061 = vadd.f32 0.0, %v1060
    %1062 = vmatmul.f32.gmra.mxu0 %v1041
    %v1063 = vpop.f32.mrf.mxu0
    %v1064 = vadd.f32 0.0, %v1063
    %1065 = vdwg.mxu0
    %1066 = vrot.lane.b32.xlu0 %v745, 104
    %v1067 = vpop.permute.xlu0 %1066
    %1068 = vrot.lane.b32.xlu0 %v748, 104
    %v1069 = vpop.permute.xlu0 %1068
    %1070 = vrot.lane.b32.xlu0 %v777, 104
    %v1071 = vpop.permute.xlu0 %1070
    %1072 = vrot.lane.b32.xlu0 %v780, 104
    %v1073 = vpop.permute.xlu0 %1072
    %v1074 = vsel %vm213, %v1067, 0
    %v1076 = vsel %vm213, %v1069, 0
    %v1078 = vsel %vm213, %v1071, 0
    %v1080 = vsel %vm213, %v1073, 0
    %1082 = vmatpush.xpose.msra.mxu0 0.0
    %1083 = vmatpush.xpose.msra.mxu0 0.0
    %1084 = vmatpush.xpose.msra.mxu0 0.0
    %1085 = vmatpush.xpose.msra.mxu0 0.0
    %1086 = vmatpush.xpose.msra.mxu0 0.0
    %1087 = vmatpush.xpose.msra.mxu0 0.0
    %1088 = vmatpush.xpose.msra.mxu0 0.0
    %1089 = vmatpush.xpose.msra.mxu0 0.0
    %1090 = vmatpush.xpose.msra.mxu0 0.0
    %1091 = vmatpush.xpose.msra.mxu0 0.0
    %1092 = vmatpush.xpose.msra.mxu0 0.0
    %1093 = vmatpush.xpose.msra.mxu0 0.0
    %1094 = vmatpush.xpose.msra.mxu0 0.0
    %1095 = vmatpush.xpose.msra.mxu0 0.0
    %1096 = vmatpush.xpose.msra.mxu0 %v1080
    %1097 = vmatpush.xpose.msra.mxu0 %v1078
    %1098 = vmatmul.f32.gmra.mxu0 %v1074
    %v1099 = vpop.f32.mrf.mxu0
    %v1100 = vadd.f32 %v716, %v1099
    %1101 = vmatmul.f32.gmra.mxu0 %v1076
    %v1102 = vpop.f32.mrf.mxu0
    %v1103 = vadd.f32 %v717, %v1102
    %1104 = vdwg.mxu0
    %v1105 = vsel %vm249, %v1100, -inf
    %1106 = vmax.xlane.f32.xlu0 %v1105
    %v1107 = vpop.xlane.xlu0 %1106
    %v1108 = vsel %vm249, %v1103, -inf
    %1109 = vmax.xlane.f32.xlu0 %v1108
    %v1110 = vpop.xlane.xlu0 %1109
    %v1111 = vsub.f32 %v1100, %v1107
    %v1112 = vsub.f32 %v1103, %v1110
    %v1113 = vmul.f32 %v1111, 1.442695
    %v1114 = vpow.pop %v1113
    %v1115 = vmul.f32 %v1112, 1.442695
    %v1116 = vpow.pop %v1115
    %v1117 = vsel %vm249, %v1114, 0.0
    %1118 = vadd.xlane.f32.xlu0 %v1117
    %v1119 = vpop.xlane.xlu0 %1118
    %v1120 = vsel %vm249, %v1116, 0.0
    %1121 = vadd.xlane.f32.xlu0 %v1120
    %v1122 = vpop.xlane.xlu0 %1121
    %v1123 = vrcp.pop %v1119
    %v1124 = vrcp.pop %v1122
    %v1125 = vmul.f32 %v1114, %v1123
    %v1126 = vmul.f32 %v1116, %v1124
    %1127 = vrot.lane.b32.xlu0 %v777, 72
    %v1128 = vpop.permute.xlu0 %1127
    %1129 = vrot.lane.b32.xlu0 %v780, 72
    %v1130 = vpop.permute.xlu0 %1129
    %v1134 = vsel %vm249, %v1125, 0
    %v1137 = vsel %vm249, %v1126, 0
    %1139 = vmatpush.msra.mxu0 0.0
    %1140 = vmatpush.msra.mxu0 0.0
    %1141 = vmatpush.msra.mxu0 0.0
    %1142 = vmatpush.msra.mxu0 0.0
    %1143 = vmatpush.msra.mxu0 0.0
    %1144 = vmatpush.msra.mxu0 0.0
    %1145 = vmatpush.msra.mxu0 0.0
    %1146 = vmatpush.msra.mxu0 0.0
    %1147 = vmatpush.msra.mxu0 0.0
    %1148 = vmatpush.msra.mxu0 0.0
    %1149 = vmatpush.msra.mxu0 0.0
    %1150 = vmatpush.msra.mxu0 0.0
    %1151 = vmatpush.msra.mxu0 0.0
    %1152 = vmatpush.msra.mxu0 0.0
    %1153 = vmatpush.msra.mxu0 %v1130
    %1154 = vmatpush.msra.mxu0 %v1128
    %1155 = vmatmul.f32.gmra.mxu0 %v1134
    %v1156 = vpop.f32.mrf.mxu0
    %v1157 = vadd.f32 0.0, %v1156
    %1158 = vmatmul.f32.gmra.mxu0 %v1137
    %v1159 = vpop.f32.mrf.mxu0
    %v1160 = vadd.f32 0.0, %v1159
    %1161 = vdwg.mxu0
    %1164 = vrot.lane.b32.xlu0 %v965, 8
    %v1165 = vpop.permute.xlu0 %1164
    %1166 = vrot.lane.b32.xlu0 %v968, 8
    %v1167 = vpop.permute.xlu0 %1166
    %1172 = vrot.lane.b32.xlu0 %v1061, 16
    %v1173 = vpop.permute.xlu0 %1172
    %1174 = vrot.lane.b32.xlu0 %v1064, 16
    %v1175 = vpop.permute.xlu0 %1174
    %1180 = vrot.lane.b32.xlu0 %v1157, 24
    %v1181 = vpop.permute.xlu0 %1180
    %1182 = vrot.lane.b32.xlu0 %v1160, 24
    %v1183 = vpop.permute.xlu0 %1182
    %v1186 = vsel %vm213, %v869, %v1165
    %v1187 = vsel %vm213, %v872, %v1167
    %v1188 = vsel %vm249, %v1186, %v1173
    %v1189 = vsel %vm249, %v1187, %v1175
    %v1190 = vsel %vm623, %v1188, %v1181
    %v1191 = vsel %vm623, %v1189, %v1183
    %v1193 = vperm.slane %v88, 0
    %v1196 = vsel %vm91, %v1190, 0
    %v1199 = vsel %vm91, %v1191, 0
    %1201 = vmatpush.msra.mxu0 0.0
    %1202 = vmatpush.msra.mxu0 0.0
    %1203 = vmatpush.msra.mxu0 0.0
    %1204 = vmatpush.msra.mxu0 0.0
    %1205 = vmatpush.msra.mxu0 0.0
    %1206 = vmatpush.msra.mxu0 0.0
    %1207 = vmatpush.msra.mxu0 0.0
    %1208 = vmatpush.msra.mxu0 0.0
    %1209 = vmatpush.msra.mxu0 0.0
    %1210 = vmatpush.msra.mxu0 0.0
    %1211 = vmatpush.msra.mxu0 0.0
    %1212 = vmatpush.msra.mxu0 0.0
    %1213 = vmatpush.msra.mxu0 %v86
    %1214 = vmatpush.msra.mxu0 %v85
    %1215 = vmatpush.msra.mxu0 %v84
    %1216 = vmatpush.msra.mxu0 %v83
    %1217 = vmatmul.f32.gmra.mxu0 %v1196
    %v1218 = vpop.f32.mrf.mxu0
    %v1219 = vadd.f32 %v1193, %v1218
    %1220 = vmatmul.f32.gmra.mxu0 %v1199
    %v1221 = vpop.f32.mrf.mxu0
    %v1222 = vadd.f32 %v1193, %v1221
    %1223 = vdwg.mxu0
    %v1224 = vadd.f32 %v712, %v1219
    %v1225 = vadd.f32 %v713, %v1222
    %v1226 = vsel %vm91, %v1224, 0.0
    %1227 = vadd.xlane.f32.xlu0 %v1226
    %v1228 = vpop.xlane.xlu0 %1227
    %v1229 = vsel %vm91, %v1225, 0.0
    %1230 = vadd.xlane.f32.xlu0 %v1229
    %v1231 = vpop.xlane.xlu0 %1230
    %v1232 = vmul.f32 %v1228, %v104
    %v1233 = vmul.f32 %v1231, %v104
    %v1234 = vsub.f32 %v1224, %v1232
    %v1235 = vsub.f32 %v1225, %v1233
    %v1236 = vmul.f32 %v1234, %v1234
    %v1237 = vmul.f32 %v1235, %v1235
    %v1238 = vsel %vm91, %v1236, 0.0
    %1239 = vadd.xlane.f32.xlu0 %v1238
    %v1240 = vpop.xlane.xlu0 %1239
    %v1241 = vsel %vm91, %v1237, 0.0
    %1242 = vadd.xlane.f32.xlu0 %v1241
    %v1243 = vpop.xlane.xlu0 %1242
    %v1244 = vmul.f32 %v1240, %v104
    %v1245 = vmul.f32 %v1243, %v104
    %v1246 = vadd.f32 %v1244, 1e-05
    %v1247 = vadd.f32 %v1245, 1e-05
    %v1248 = vrsqrt.pop %v1246
    %v1249 = vmul.f32 %v1248, %v1246
    %v1250 = vmul.f32 %v1249, %v1248
    %v1251 = vmul.f32 0.5, %v1250
    %v1252 = vsub.f32 1.5, %v1251
    %v1253 = vmul.f32 %v1248, %v1252
    %vm1254 = vweird.f32 %v1246
    %vm1255 = vweird.f32 %v1248
    %vm1256 = vmor %vm1254, %vm1255
    %v1257 = vsel %vm1256, %v1248, %v1253
    %v1258 = vrsqrt.pop %v1247
    %v1259 = vmul.f32 %v1258, %v1247
    %v1260 = vmul.f32 %v1259, %v1258
    %v1261 = vmul.f32 0.5, %v1260
    %v1262 = vsub.f32 1.5, %v1261
    %v1263 = vmul.f32 %v1258, %v1262
    %vm1264 = vweird.f32 %v1247
    %vm1265 = vweird.f32 %v1258
    %vm1266 = vmor %vm1264, %vm1265
    %v1267 = vsel %vm1266, %v1258, %v1263
    %v1268 = vmul.f32 %v1234, %v1257
    %v1269 = vmul.f32 %v1235, %v1267
    %v1271 = vperm.slane %v55, 0
    %v1273 = vmul.f32 %v1268, %v1271
    %v1274 = vmul.f32 %v1269, %v1271
    %v1276 = vperm.slane %v56, 0
    %v1278 = vadd.f32 %v1273, %v1276
    %v1279 = vadd.f32 %v1274, %v1276
    %v1280 = vld [vmem:[%s11] sm:$0xff]
    %v1281 = vld [vmem:[%s11 + $0x8] sm:$0xff]
    %v1282 = vld [vmem:[%s11 + $0x10] sm:$0xff]
    %v1283 = vld [vmem:[%s11 + $0x18] sm:$0xff]
    %v1284 = vld [vmem:[%s12] sm:$0x1]
    %v1286 = vperm.slane %v1284, 0
    %v1289 = vsel %vm91, %v1278, 0
    %v1292 = vsel %vm91, %v1279, 0
    %1294 = vmatpush.msra.mxu0 0.0
    %1295 = vmatpush.msra.mxu0 0.0
    %1296 = vmatpush.msra.mxu0 0.0
    %1297 = vmatpush.msra.mxu0 0.0
    %1298 = vmatpush.msra.mxu0 0.0
    %1299 = vmatpush.msra.mxu0 0.0
    %1300 = vmatpush.msra.mxu0 0.0
    %1301 = vmatpush.msra.mxu0 0.0
    %1302 = vmatpush.msra.mxu0 0.0
    %1303 = vmatpush.msra.mxu0 0.0
    %1304 = vmatpush.msra.mxu0 0.0
    %1305 = vmatpush.msra.mxu0 0.0
    %1306 = vmatpush.msra.mxu0 %v1283
    %1307 = vmatpush.msra.mxu0 %v1282
    %1308 = vmatpush.msra.mxu0 %v1281
    %1309 = vmatpush.msra.mxu0 %v1280
    %1310 = vmatmul.f32.gmra.mxu0 %v1289
    %v1311 = vpop.f32.mrf.mxu0
    %v1312 = vadd.f32 %v1286, %v1311
    %1313 = vmatmul.f32.gmra.mxu0 %v1292
    %v1314 = vpop.f32.mrf.mxu0
    %v1315 = vadd.f32 %v1286, %v1314
    %1316 = vdwg.mxu0
    %v1317 = vmul.f32 %v1312, 0.5
    %v1318 = vmul.f32 %v1315, 0.5
    %v1319 = vmul.f32 %v1312, 0.044715
    %v1320 = vmul.f32 %v1315, 0.044715
    %v1321 = vmul.f32 %v1319, %v1312
    %v1322 = vmul.f32 %v1320, %v1315
    %v1323 = vmul.f32 %v1321, %v1312
    %v1324 = vmul.f32 %v1322, %v1315
    %v1325 = vadd.f32 %v1312, %v1323
    %v1326 = vadd.f32 %v1315, %v1324
    %v1327 = vmul.f32 %v1325, 0.7978846
    %v1328 = vmul.f32 %v1326, 0.7978846
    %v1329 = vtanh.pop %v1327
    %v1330 = vtanh.pop %v1328
    %v1331 = vadd.f32 %v1329, 1.0
    %v1332 = vadd.f32 %v1330, 1.0
    %v1333 = vmul.f32 %v1317, %v1331
    %v1334 = vmul.f32 %v1318, %v1332
    %v1335 = vld [vmem:[%s13] sm:$0xff]
    %v1336 = vld [vmem:[%s13 + $0x8] sm:$0xff]
    %v1337 = vld [vmem:[%s13 + $0x10] sm:$0xff]
    %v1338 = vld [vmem:[%s13 + $0x18] sm:$0xff]
    %v1339 = vld [vmem:[%s13 + $0x20] sm:$0xff]
    %v1340 = vld [vmem:[%s13 + $0x28] sm:$0xff]
    %v1341 = vld [vmem:[%s13 + $0x30] sm:$0xff]
    %v1342 = vld [vmem:[%s13 + $0x38] sm:$0xff]
    %v1343 = vld [vmem:[%s14] sm:$0x1]
    %v1345 = vperm.slane %v1343, 0
    %vm1347 = vcmask 523264
    %v1349 = vsel %vm1347, %v1333, 0
    %v1352 = vsel %vm1347, %v1334, 0
    %1354 = vmatpush.msra.mxu0 0.0
    %1355 = vmatpush.msra.mxu0 0.0
    %1356 = vmatpush.msra.mxu0 0.0
    %1357 = vmatpush.msra.mxu0 0.0
    %1358 = vmatpush.msra.mxu0 0.0
    %1359 = vmatpush.msra.mxu0 0.0
    %1360 = vmatpush.msra.mxu0 0.0
    %1361 = vmatpush.msra.mxu0 0.0
    %1362 = vmatpush.msra.mxu0 %v1342
    %1363 = vmatpush.msra.mxu0 %v1341
    %1364 = vmatpush.msra.mxu0 %v1340
    %1365 = vmatpush.msra.mxu0 %v1339
    %1366 = vmatpush.msra.mxu0 %v1338
    %1367 = vmatpush.msra.mxu0 %v1337
    %1368 = vmatpush.msra.mxu0 %v1336
    %1369 = vmatpush.msra.mxu0 %v1335
    %1370 = vmatmul.f32.gmra.mxu0 %v1349
    %v1371 = vpop.f32.mrf.mxu0
    %v1372 = vadd.f32 %v1345, %v1371
    %1373 = vmatmul.f32.gmra.mxu0 %v1352
    %v1374 = vpop.f32.mrf.mxu0
    %v1375 = vadd.f32 %v1345, %v1374
    %1376 = vdwg.mxu0
    %v1377 = vadd.f32 %v1278, %v1372
    %v1378 = vadd.f32 %v1279, %v1375
    %v1379 = vsel %vm91, %v1377, 0.0
    %1380 = vadd.xlane.f32.xlu0 %v1379
    %v1381 = vpop.xlane.xlu0 %1380
    %v1382 = vsel %vm91, %v1378, 0.0
    %1383 = vadd.xlane.f32.xlu0 %v1382
    %v1384 = vpop.xlane.xlu0 %1383
    %v1385 = vmul.f32 %v1381, %v104
    %v1386 = vmul.f32 %v1384, %v104
    %v1387 = vsub.f32 %v1377, %v1385
    %v1388 = vsub.f32 %v1378, %v1386
    %v1389 = vmul.f32 %v1387, %v1387
    %v1390 = vmul.f32 %v1388, %v1388
    %v1391 = vsel %vm91, %v1389, 0.0
    %1392 = vadd.xlane.f32.xlu0 %v1391
    %v1393 = vpop.xlane.xlu0 %1392
    %v1394 = vsel %vm91, %v1390, 0.0
    %1395 = vadd.xlane.f32.xlu0 %v1394
    %v1396 = vpop.xlane.xlu0 %1395
    %v1397 = vmul.f32 %v1393, %v104
    %v1398 = vmul.f32 %v1396, %v104
    %v1399 = vadd.f32 %v1397, 1e-05
    %v1400 = vadd.f32 %v1398, 1e-05
    %v1401 = vrsqrt.pop %v1399
    %v1402 = vmul.f32 %v1401, %v1399
    %v1403 = vmul.f32 %v1402, %v1401
    %v1404 = vmul.f32 0.5, %v1403
    %v1405 = vsub.f32 1.5, %v1404
    %v1406 = vmul.f32 %v1401, %v1405
    %vm1407 = vweird.f32 %v1399
    %vm1408 = vweird.f32 %v1401
    %vm1409 = vmor %vm1407, %vm1408
    %v1410 = vsel %vm1409, %v1401, %v1406
    %v1411 = vrsqrt.pop %v1400
    %v1412 = vmul.f32 %v1411, %v1400
    %v1413 = vmul.f32 %v1412, %v1411
    %v1414 = vmul.f32 0.5, %v1413
    %v1415 = vsub.f32 1.5, %v1414
    %v1416 = vmul.f32 %v1411, %v1415
    %vm1417 = vweird.f32 %v1400
    %vm1418 = vweird.f32 %v1411
    %vm1419 = vmor %vm1417, %vm1418
    %v1420 = vsel %vm1419, %v1411, %v1416
    %v1421 = vmul.f32 %v1387, %v1410
    %v1422 = vmul.f32 %v1388, %v1420
    %v1424 = vperm.slane %v57, 0
    %v1426 = vmul.f32 %v1421, %v1424
    %v1427 = vmul.f32 %v1422, %v1424
    %v1429 = vperm.slane %v58, 0
    %v1431 = vadd.f32 %v1426, %v1429
    %v1432 = vadd.f32 %v1427, %v1429
    %1433 = vst.msk [vmem:[#allocation2] sm:$0xff] %vm91, %v1431
    %1434 = vst.msk [vmem:[#allocation2 + $0x8] sm:$0xff] %vm91, %v1432
    // Predicated region
    $region62: #{parabart_decoder_forward.1} parent=1 // pred_check
      _
    $region63: #{parabart_decoder_forward.1} parent=1 // pred_check_branch
      %1436 = sbr.rel (0) target = $region65
    $region64: #{parabart_decoder_forward.1} parent=1 // pred_region
      %1438 = vsyncadd [#allocation3], 0
      %s1439 = sshll.u32 [#allocation2], 4
      %s1440 = int_to_ptr.vmem [resolvable:$true] %s1439
      %s1441 = sshll.u32 %s15, 4
      %s1442 = int_to_ptr.hbm [resolvable:$true] %s1441
      %1447 = dma.vmem_to_hbm [thread:$0]  %s1440, 256, %s1442, [#allocation3], 128, 128, 8
    $region65: #{parabart_decoder_forward.1} parent=1 // pred_fallthru
      _
    // Predicated region
    $region66: #{parabart_decoder_forward.1} parent=1 // pred_check
      _
    $region67: #{parabart_decoder_forward.1} parent=1 // pred_check_branch
      %1449 = sbr.rel (0) target = $region69
    $region68: #{parabart_decoder_forward.1} parent=1 // pred_region
      %1451 = dma.done [#allocation3], 256
    $region69: #{parabart_decoder_forward.1} parent=1 // pred_fallthru
      _
    %1452 = vsyncpa [#allocation3], 1

</llo_original>
